<compile_context>
chip_gen: v5e
topology: v5e:2x2
jax: 0.10.0
libtpu: 0.0.40
codegen_flags: <defaults>
</compile_context>

<pallas_src>
import jax
import jax.numpy as jnp
from jax.experimental import pallas as pl
from jax.experimental.pallas import tpu as pltpu

BN_EPS = 1e-5
_BLOB_WIDTH = 128


# ----------------------------------------------------------------------------
# Host-side parameter preparation: fold BN, stack layer-2 LSTM weights, pack
# everything into one (R, 128) blob with 8-row-aligned entries.
# ----------------------------------------------------------------------------
def _fold_bn(cp):
    scale = cp["gamma"] * jax.lax.rsqrt(cp["var"] + BN_EPS)      # (1, Cout)
    w = cp["w"] * scale[0][None, None, :]                        # (K, Cin, Cout)
    b = (cp["b"] - cp["mean"]) * scale + cp["beta"]              # (1, Cout)
    return w, b


def _pack_weights(params):
    """Returns (blob (R,128) f32, layout {name: (row_off, rows, cols)})."""
    entries = []
    for i, cp in enumerate(params["conv"], start=1):
        w, b = _fold_bn(cp)                                      # (3, Cin, Cout)
        for k in range(w.shape[0]):
            entries.append((f"c{i}w{k}", w[k]))                  # (Cin, Cout)
        entries.append((f"c{i}b", b))
    l1, l2 = params["lstm"]
    entries += [
        ("l1_wih", l1["wih_t"]), ("l1_whh", l1["whh_t"]), ("l1_b", l1["bias"]),
        # layer-2 step becomes one matmul on concat([h1_t, h2_{t-1}])
        ("l2_w", jnp.concatenate([l2["wih_t"], l2["whh_t"]], axis=0)),
        ("l2_b", l2["bias"]),
    ]
    fc = params["fc"]
    for i in (1, 2, 3):
        entries += [(f"f{i}w", fc[f"w{i}"]), (f"f{i}b", fc[f"b{i}"])]

    layout, blocks, off = {}, [], 0
    for name, arr in entries:
        r, c = arr.shape
        assert c <= _BLOB_WIDTH, name
        rpad = -(-r // 8) * 8                                    # 8-row align
        layout[name] = (off, r, c)
        blocks.append(jnp.pad(arr.astype(jnp.float32),
                              ((0, rpad - r), (0, _BLOB_WIDTH - c))))
        off += rpad
    return jnp.concatenate(blocks, axis=0), layout


# ----------------------------------------------------------------------------
# Fused kernel (closes over the static blob layout and model dims)
# ----------------------------------------------------------------------------
def _make_kernel(layout, B, H, T):

    def kernel(x_ref, h0_ref, c0_ref, w_ref, o_ref, scr1, scr2, scr3):
        def get(name):
            off, r, c = layout[name]
            return w_ref[off:off + r, 0:c]

        def conv_relu_pool(xb, idx, cin, cout, scr):
            """Conv1d(k=3, valid) [BN folded in] + ReLU + MaxPool1d(3, 3)."""
            lin = xb.shape[0]
            lconv = lin - 2
            lp = lconv // 3
            acc = jnp.zeros((lconv, cout), jnp.float32)
            for k in range(3):                          # static unroll
                xk = xb[k:k + lconv, :]                 # (Lconv, Cin)
                wk = get(f"c{idx}w{k}")                 # (Cin, Cout)
                if cin == 1:
                    acc = acc + xk * wk                 # broadcast outer prod
                else:
                    acc = acc + jnp.dot(xk, wk,
                                        preferred_element_type=jnp.float32)
            acc = jnp.maximum(acc + get(f"c{idx}b"), 0.0)        # bias + ReLU
            # 3-way window max on registers; one stride-3 read via scratch.
            m = jnp.maximum(jnp.maximum(acc[0:lconv - 2, :],
                                        acc[1:lconv - 1, :]),
                            acc[2:lconv, :])
            scr[...] = m
            return scr[pl.ds(0, lp, stride=3), :]       # (Lp, Cout)

        # ---- hoisted weight reads ----------------------------------------
        wih1, whh1, bl1 = get("l1_wih"), get("l1_whh"), get("l1_b")
        w2s, bl2 = get("l2_w"), get("l2_b")

        # ---- conv stack + hoisted LSTM layer-1 input projection -----------
        gx = []                                         # per-sample (T, 4H)
        for b in range(B):                              # static loop, B tiny
            p = conv_relu_pool(x_ref[b], 1, 1, 16, scr1)
            p = conv_relu_pool(p, 2, 16, 32, scr2)
            p = conv_relu_pool(p, 3, 32, 64, scr3)      # (T, 64)
            gx.append(jnp.dot(p, wih1, preferred_element_type=jnp.float32)
                      + bl1)
        # per-step gate rows for the whole batch, built once outside the loop
        gx_t = [jnp.concatenate([gx[b][t:t + 1, :] for b in range(B)], axis=0)
                for t in range(T)]                      # T x (B, 4H)

        # ---- interleaved 2-layer LSTM (inter-layer dropout = identity) ----
        h1, c1 = h0_ref[0], c0_ref[0]                   # (B, H)
        h2, c2 = h0_ref[1], c0_ref[1]

        def cell(gates, c_prev):                        # PyTorch order i,f,g,o
            s = jax.nn.sigmoid(gates)                   # one EUP pass / vreg
            i_g, f_g, o_g = s[:, 0:H], s[:, H:2 * H], s[:, 3 * H:4 * H]
            g_g = jnp.tanh(gates[:, 2 * H:3 * H])
            c_new = f_g * c_prev + i_g * g_g
            return o_g * jnp.tanh(c_new), c_new

        for t in range(T + 1):                          # skewed by one step
            h1_in = h1                                  # layer-1 h after t-1
            if t < T:                                   # layer-1 step t
                g1 = gx_t[t] + jnp.dot(h1_in, whh1,
                                       preferred_element_type=jnp.float32)
                h1, c1 = cell(g1, c1)
            if t >= 1:                                  # layer-2 step t-1
                x2 = jnp.concatenate([h1_in, h2], axis=1)        # (B, 2H)
                g2 = jnp.dot(x2, w2s,
                             preferred_element_type=jnp.float32) + bl2
                h2, c2 = cell(g2, c2)

        # ---- classifier head (Dropout = identity in eval mode) ------------
        y = jnp.maximum(jnp.dot(h2, get("f1w"),
                                preferred_element_type=jnp.float32)
                        + get("f1b"), 0.0)
        y = jnp.maximum(jnp.dot(y, get("f2w"),
                                preferred_element_type=jnp.float32)
                        + get("f2b"), 0.0)
        o_ref[...] = (jnp.dot(y, get("f3w"),
                              preferred_element_type=jnp.float32)
                      + get("f3b"))

    return kernel


# ----------------------------------------------------------------------------
# Wrapper: one fused pallas_call for the whole forward pass
# ----------------------------------------------------------------------------
def lstm1dcnn_forward(x, params, h0, c0):
    """x: (B, L) f32;  h0/c0: (num_layer, B, H) f32 (PyTorch layout)."""
    B, L = x.shape
    assert len(params["conv"]) == 3 and len(params["lstm"]) == 2
    H = params["lstm"][0]["whh_t"].shape[0]
    ncls = params["fc"]["w3"].shape[-1]
    assert h0.shape == (2, B, H) and c0.shape == (2, B, H)

    l1 = (L - 2) // 3                                   # pooled len after conv1
    l2 = (l1 - 2) // 3                                  # after conv2
    T = (l2 - 2) // 3                                   # LSTM sequence length
    assert T >= 1

    blob, layout = _pack_weights(params)
    R = blob.shape[0]
    x3 = x[:, :, None].astype(jnp.float32)              # (B, L, 1) channels-last

    kernel = _make_kernel(layout, B, H, T)

    flops = 2 * B * (3 * (L - 2) * 16                   # conv1 (cin = 1)
                     + 3 * (l1 - 2) * 16 * 32           # conv2
                     + 3 * (l2 - 2) * 32 * 64           # conv3
                     + T * (64 + H) * 4 * H             # lstm1 proj + recur
                     + T * 2 * H * 4 * H                # lstm2 (stacked W)
                     + H * 16 + 16 * 8 + 8 * ncls)      # fc head
    cost = pl.CostEstimate(
        flops=int(flops),
        transcendentals=int(2 * B * T * 6 * H),
        bytes_accessed=int(x3.size + blob.size + h0.size + c0.size
                           + B * ncls) * 4)

    out = pl.pallas_call(
        kernel,
        out_shape=jax.ShapeDtypeStruct((B, ncls), jnp.float32),
        grid_spec=pltpu.PrefetchScalarGridSpec(
            num_scalar_prefetch=0,
            grid=(1,),                                  # whole batch, one step
            in_specs=[
                pl.BlockSpec((B, L, 1), lambda i: (0, 0, 0)),
                pl.BlockSpec(h0.shape, lambda i: (0, 0, 0)),
                pl.BlockSpec(c0.shape, lambda i: (0, 0, 0)),
                pl.BlockSpec((R, _BLOB_WIDTH), lambda i: (0, 0)),
            ],
            out_specs=pl.BlockSpec((B, ncls), lambda i: (0, 0)),
            scratch_shapes=[
                pltpu.VMEM((L - 4, 16), jnp.float32),   # conv1 window-max
                pltpu.VMEM((l1 - 4, 32), jnp.float32),  # conv2 window-max
                pltpu.VMEM((l2 - 4, 64), jnp.float32),  # conv3 window-max
            ]),
        compiler_params=pltpu.CompilerParams(
            dimension_semantics=("arbitrary",)),
        cost_estimate=cost,
    )(x3, h0, c0, blob)
    return out                                          # (B, num_classes)


# ----------------------------------------------------------------------------
# Parameter init (deterministic, synthetic; mirrors the PyTorch module)
# ----------------------------------------------------------------------------
def _uniform(key, shape, scale):
    return jax.random.uniform(key, shape, jnp.float32, -scale, scale)


def init_params(key, hidden_size1, num_layer, num_classes):
    params = {"conv": [], "lstm": [], "fc": {}}
    for cin, cout in [(1, 16), (16, 32), (32, 64)]:
        key, k1, k2 = jax.random.split(key, 3)
        scale = 1.0 / (cin * 3) ** 0.5
        params["conv"].append({
            "w": _uniform(k1, (3, cin, cout), scale),        # (K, Cin, Cout)
            "b": _uniform(k2, (1, cout), scale),
            "gamma": jnp.ones((1, cout), jnp.float32),       # BN eval defaults
            "beta": jnp.zeros((1, cout), jnp.float32),
            "mean": jnp.zeros((1, cout), jnp.float32),
            "var": jnp.ones((1, cout), jnp.float32),
        })
    H = hidden_size1
    in_dim = 64
    for _ in range(num_layer):
        key, k1, k2, k3, k4 = jax.random.split(key, 5)
        scale = 1.0 / H ** 0.5
        params["lstm"].append({
            "wih_t": _uniform(k1, (in_dim, 4 * H), scale),   # W_ih^T
            "whh_t": _uniform(k2, (H, 4 * H), scale),        # W_hh^T
            # NOTE: when loading real PyTorch weights, bias must be b_ih + b_hh
            "bias": _uniform(k3, (1, 4 * H), scale) + _uniform(k4, (1, 4 * H), scale),
        })
        in_dim = H
    for i, (din, dout) in enumerate([(H, 16), (16, 8), (8, num_classes)]):
        key, k1, k2 = jax.random.split(key, 3)
        scale = 1.0 / din ** 0.5
        params["fc"][f"w{i + 1}"] = _uniform(k1, (din, dout), scale)
        params["fc"][f"b{i + 1}"] = _uniform(k2, (1, dout), scale)
    return params


if __name__ == "__main__":
    # Module config: input_size=1 (forced by x.unsqueeze(1)), hidden_size1=32,
    # num_layer=2, num_classes=3, D=1 (unidirectional).
    B, L = 2, 134            # 134 -> 132 -> 44 -> 42 -> 14 -> 12 -> T=4 steps
    HIDDEN1, NUM_LAYER, NUM_CLASSES, D = 32, 2, 3, 1

    root = jax.random.PRNGKey(0)
    k_x, k_p, k_h, k_c = jax.random.split(root, 4)
    x = jax.random.normal(k_x, (B, L), jnp.float32)
    params = init_params(k_p, HIDDEN1, NUM_LAYER, NUM_CLASSES)

    # TODO(synk): PyTorch forward draws fresh torch.randn h0/c0 per call and
    # casts them to float64; TPU Pallas has no f64, so deterministic float32
    # initial states are passed in instead (accepted deviation).
    h0 = jax.random.normal(k_h, (D * NUM_LAYER, B, HIDDEN1), jnp.float32)
    c0 = jax.random.normal(k_c, (D * NUM_LAYER, B, HIDDEN1), jnp.float32)

    out = jax.jit(lstm1dcnn_forward)(x, params, h0, c0)
    jax.block_until_ready(out)
    assert out.shape == (B, NUM_CLASSES) and out.dtype == jnp.float32
    print("KERNEL_OK")
</pallas_src>

<mosaic_0001>
module attributes {stable_mosaic.version = 11 : i64} {
  func.func @kernel(%arg0: i32, %arg1: memref<2x134x1xf32, #tpu.memory_space<vmem>>, %arg2: memref<2x2x32xf32, #tpu.memory_space<vmem>>, %arg3: memref<2x2x32xf32, #tpu.memory_space<vmem>>, %arg4: memref<448x128xf32, #tpu.memory_space<vmem>>, %arg5: memref<2x3xf32, #tpu.memory_space<vmem>>, %arg6: memref<130x16xf32, #tpu.memory_space<vmem>>, %arg7: memref<40x32xf32, #tpu.memory_space<vmem>>, %arg8: memref<10x64xf32, #tpu.memory_space<vmem>>) attributes {dimension_semantics = [#tpu.dimension_semantics<arbitrary>], iteration_bounds = array<i64: 1>, scalar_prefetch = 0 : i64, scratch_operands = 3 : i64, tpu.core_type = #tpu.core_type<tc>, window_params = [{pipeline_mode = #tpu.pipeline_mode<synchronous>, transform_indices = @transform_0, window_bounds = array<i64: 2, 134, 1>}, {pipeline_mode = #tpu.pipeline_mode<synchronous>, transform_indices = @transform_1, window_bounds = array<i64: 2, 2, 32>}, {pipeline_mode = #tpu.pipeline_mode<synchronous>, transform_indices = @transform_2, window_bounds = array<i64: 2, 2, 32>}, {pipeline_mode = #tpu.pipeline_mode<synchronous>, transform_indices = @transform_3, window_bounds = array<i64: 448, 128>}, {pipeline_mode = #tpu.pipeline_mode<synchronous>, transform_indices = @transform_4, window_bounds = array<i64: 2, 3>}]} {
    %c192 = arith.constant 192 : index
    %c0 = arith.constant 0 : index
    %0 = vector.load %arg4[%c192, %c0] : memref<448x128xf32, #tpu.memory_space<vmem>>, vector<64x128xf32>
    %c256 = arith.constant 256 : index
    %c0_0 = arith.constant 0 : index
    %1 = vector.load %arg4[%c256, %c0_0] : memref<448x128xf32, #tpu.memory_space<vmem>>, vector<32x128xf32>
    %c288 = arith.constant 288 : index
    %c0_1 = arith.constant 0 : index
    %2 = vector.load %arg4[%c288, %c0_1] : memref<448x128xf32, #tpu.memory_space<vmem>>, vector<1x128xf32>
    %c296 = arith.constant 296 : index
    %c0_2 = arith.constant 0 : index
    %3 = vector.load %arg4[%c296, %c0_2] : memref<448x128xf32, #tpu.memory_space<vmem>>, vector<64x128xf32>
    %c360 = arith.constant 360 : index
    %c0_3 = arith.constant 0 : index
    %4 = vector.load %arg4[%c360, %c0_3] : memref<448x128xf32, #tpu.memory_space<vmem>>, vector<1x128xf32>
    %c0_4 = arith.constant 0 : index
    %c0_5 = arith.constant 0 : index
    %c0_6 = arith.constant 0 : index
    %5 = vector.load %arg1[%c0_4, %c0_5, %c0_6] : memref<2x134x1xf32, #tpu.memory_space<vmem>>, vector<1x134x1xf32>
    %6 = vector.shape_cast %5 : vector<1x134x1xf32> to vector<134x1xf32>
    %cst = arith.constant 0.000000e+00 : f32
    %7 = vector.broadcast %cst : f32 to vector<132x16xf32>
    %8 = vector.extract_strided_slice %6 {offsets = [0, 0], sizes = [132, 1], strides = [1, 1]} : vector<134x1xf32> to vector<132x1xf32>
    %c0_7 = arith.constant 0 : index
    %c0_8 = arith.constant 0 : index
    %9 = vector.load %arg4[%c0_7, %c0_8] : memref<448x128xf32, #tpu.memory_space<vmem>>, vector<1x16xf32>
    %10 = vector.broadcast %8 : vector<132x1xf32> to vector<132x16xf32>
    %11 = vector.broadcast %9 : vector<1x16xf32> to vector<132x16xf32>
    %12 = arith.mulf %10, %11 : vector<132x16xf32>
    %13 = arith.addf %7, %12 : vector<132x16xf32>
    %14 = vector.extract_strided_slice %6 {offsets = [1, 0], sizes = [132, 1], strides = [1, 1]} : vector<134x1xf32> to vector<132x1xf32>
    %c8 = arith.constant 8 : index
    %c0_9 = arith.constant 0 : index
    %15 = vector.load %arg4[%c8, %c0_9] : memref<448x128xf32, #tpu.memory_space<vmem>>, vector<1x16xf32>
    %16 = vector.broadcast %14 : vector<132x1xf32> to vector<132x16xf32>
    %17 = vector.broadcast %15 : vector<1x16xf32> to vector<132x16xf32>
    %18 = arith.mulf %16, %17 : vector<132x16xf32>
    %19 = arith.addf %13, %18 : vector<132x16xf32>
    %20 = vector.extract_strided_slice %6 {offsets = [2, 0], sizes = [132, 1], strides = [1, 1]} : vector<134x1xf32> to vector<132x1xf32>
    %c16 = arith.constant 16 : index
    %c0_10 = arith.constant 0 : index
    %21 = vector.load %arg4[%c16, %c0_10] : memref<448x128xf32, #tpu.memory_space<vmem>>, vector<1x16xf32>
    %22 = vector.broadcast %20 : vector<132x1xf32> to vector<132x16xf32>
    %23 = vector.broadcast %21 : vector<1x16xf32> to vector<132x16xf32>
    %24 = arith.mulf %22, %23 : vector<132x16xf32>
    %25 = arith.addf %19, %24 : vector<132x16xf32>
    %c24 = arith.constant 24 : index
    %c0_11 = arith.constant 0 : index
    %26 = vector.load %arg4[%c24, %c0_11] : memref<448x128xf32, #tpu.memory_space<vmem>>, vector<1x16xf32>
    %27 = vector.broadcast %26 : vector<1x16xf32> to vector<132x16xf32>
    %28 = arith.addf %25, %27 : vector<132x16xf32>
    %cst_12 = arith.constant 0.000000e+00 : f32
    %29 = vector.broadcast %cst_12 : f32 to vector<132x16xf32>
    %30 = arith.maximumf %28, %29 : vector<132x16xf32>
    %31 = vector.extract_strided_slice %30 {offsets = [0, 0], sizes = [130, 16], strides = [1, 1]} : vector<132x16xf32> to vector<130x16xf32>
    %32 = vector.extract_strided_slice %30 {offsets = [1, 0], sizes = [130, 16], strides = [1, 1]} : vector<132x16xf32> to vector<130x16xf32>
    %33 = arith.maximumf %31, %32 : vector<130x16xf32>
    %34 = vector.extract_strided_slice %30 {offsets = [2, 0], sizes = [130, 16], strides = [1, 1]} : vector<132x16xf32> to vector<130x16xf32>
    %35 = arith.maximumf %33, %34 : vector<130x16xf32>
    %c0_13 = arith.constant 0 : index
    %c0_14 = arith.constant 0 : index
    %36 = vector.load %arg6[%c0_13, %c0_14] : memref<130x16xf32, #tpu.memory_space<vmem>>, vector<130x16xf32>
    tpu.vector_store %arg6[%c0_13, %c0_14], %35 {strides = array<i32>} : memref<130x16xf32, #tpu.memory_space<vmem>>, vector<130x16xf32>,
    %c0_15 = arith.constant 0 : index
    %c0_16 = arith.constant 0 : index
    %37 = tpu.strided_load %arg6[%c0_15, %c0_16] {strides = array<i32: 3, 1>} : memref<130x16xf32, #tpu.memory_space<vmem>>, vector<44x16xf32>
    %cst_17 = arith.constant 0.000000e+00 : f32
    %38 = vector.broadcast %cst_17 : f32 to vector<42x32xf32>
    %39 = vector.extract_strided_slice %37 {offsets = [0, 0], sizes = [42, 16], strides = [1, 1]} : vector<44x16xf32> to vector<42x16xf32>
    %c32 = arith.constant 32 : index
    %c0_18 = arith.constant 0 : index
    %40 = vector.load %arg4[%c32, %c0_18] : memref<448x128xf32, #tpu.memory_space<vmem>>, vector<16x32xf32>
    %cst_19 = arith.constant dense<0.000000e+00> : vector<42x32xf32>
    %41 = tpu.matmul %39, %40, %cst_19 {dimension_numbers = #tpu.dot_dimension_numbers<[1], [0], [0], [1], [0, 0, 1, 1], [], []>} : vector<42x16xf32>, vector<16x32xf32>, vector<42x32xf32> -> vector<42x32xf32>
    %42 = arith.addf %38, %41 : vector<42x32xf32>
    %43 = vector.extract_strided_slice %37 {offsets = [1, 0], sizes = [42, 16], strides = [1, 1]} : vector<44x16xf32> to vector<42x16xf32>
    %c48 = arith.constant 48 : index
    %c0_20 = arith.constant 0 : index
    %44 = vector.load %arg4[%c48, %c0_20] : memref<448x128xf32, #tpu.memory_space<vmem>>, vector<16x32xf32>
    %cst_21 = arith.constant dense<0.000000e+00> : vector<42x32xf32>
    %45 = tpu.matmul %43, %44, %cst_21 {dimension_numbers = #tpu.dot_dimension_numbers<[1], [0], [0], [1], [0, 0, 1, 1], [], []>} : vector<42x16xf32>, vector<16x32xf32>, vector<42x32xf32> -> vector<42x32xf32>
    %46 = arith.addf %42, %45 : vector<42x32xf32>
    %47 = vector.extract_strided_slice %37 {offsets = [2, 0], sizes = [42, 16], strides = [1, 1]} : vector<44x16xf32> to vector<42x16xf32>
    %c64 = arith.constant 64 : index
    %c0_22 = arith.constant 0 : index
    %48 = vector.load %arg4[%c64, %c0_22] : memref<448x128xf32, #tpu.memory_space<vmem>>, vector<16x32xf32>
    %cst_23 = arith.constant dense<0.000000e+00> : vector<42x32xf32>
    %49 = tpu.matmul %47, %48, %cst_23 {dimension_numbers = #tpu.dot_dimension_numbers<[1], [0], [0], [1], [0, 0, 1, 1], [], []>} : vector<42x16xf32>, vector<16x32xf32>, vector<42x32xf32> -> vector<42x32xf32>
    %50 = arith.addf %46, %49 : vector<42x32xf32>
    %c80 = arith.constant 80 : index
    %c0_24 = arith.constant 0 : index
    %51 = vector.load %arg4[%c80, %c0_24] : memref<448x128xf32, #tpu.memory_space<vmem>>, vector<1x32xf32>
    %52 = vector.broadcast %51 : vector<1x32xf32> to vector<42x32xf32>
    %53 = arith.addf %50, %52 : vector<42x32xf32>
    %cst_25 = arith.constant 0.000000e+00 : f32
    %54 = vector.broadcast %cst_25 : f32 to vector<42x32xf32>
    %55 = arith.maximumf %53, %54 : vector<42x32xf32>
    %56 = vector.extract_strided_slice %55 {offsets = [0, 0], sizes = [40, 32], strides = [1, 1]} : vector<42x32xf32> to vector<40x32xf32>
    %57 = vector.extract_strided_slice %55 {offsets = [1, 0], sizes = [40, 32], strides = [1, 1]} : vector<42x32xf32> to vector<40x32xf32>
    %58 = arith.maximumf %56, %57 : vector<40x32xf32>
    %59 = vector.extract_strided_slice %55 {offsets = [2, 0], sizes = [40, 32], strides = [1, 1]} : vector<42x32xf32> to vector<40x32xf32>
    %60 = arith.maximumf %58, %59 : vector<40x32xf32>
    %c0_26 = arith.constant 0 : index
    %c0_27 = arith.constant 0 : index
    %61 = vector.load %arg7[%c0_26, %c0_27] : memref<40x32xf32, #tpu.memory_space<vmem>>, vector<40x32xf32>
    tpu.vector_store %arg7[%c0_26, %c0_27], %60 {strides = array<i32>} : memref<40x32xf32, #tpu.memory_space<vmem>>, vector<40x32xf32>,
    %c0_28 = arith.constant 0 : index
    %c0_29 = arith.constant 0 : index
    %62 = tpu.strided_load %arg7[%c0_28, %c0_29] {strides = array<i32: 3, 1>} : memref<40x32xf32, #tpu.memory_space<vmem>>, vector<14x32xf32>
    %cst_30 = arith.constant 0.000000e+00 : f32
    %63 = vector.broadcast %cst_30 : f32 to vector<12x64xf32>
    %64 = vector.extract_strided_slice %62 {offsets = [0, 0], sizes = [12, 32], strides = [1, 1]} : vector<14x32xf32> to vector<12x32xf32>
    %c88 = arith.constant 88 : index
    %c0_31 = arith.constant 0 : index
    %65 = vector.load %arg4[%c88, %c0_31] : memref<448x128xf32, #tpu.memory_space<vmem>>, vector<32x64xf32>
    %cst_32 = arith.constant dense<0.000000e+00> : vector<12x64xf32>
    %66 = tpu.matmul %64, %65, %cst_32 {dimension_numbers = #tpu.dot_dimension_numbers<[1], [0], [0], [1], [0, 0, 1, 1], [], []>} : vector<12x32xf32>, vector<32x64xf32>, vector<12x64xf32> -> vector<12x64xf32>
    %67 = arith.addf %63, %66 : vector<12x64xf32>
    %68 = vector.extract_strided_slice %62 {offsets = [1, 0], sizes = [12, 32], strides = [1, 1]} : vector<14x32xf32> to vector<12x32xf32>
    %c120 = arith.constant 120 : index
    %c0_33 = arith.constant 0 : index
    %69 = vector.load %arg4[%c120, %c0_33] : memref<448x128xf32, #tpu.memory_space<vmem>>, vector<32x64xf32>
    %cst_34 = arith.constant dense<0.000000e+00> : vector<12x64xf32>
    %70 = tpu.matmul %68, %69, %cst_34 {dimension_numbers = #tpu.dot_dimension_numbers<[1], [0], [0], [1], [0, 0, 1, 1], [], []>} : vector<12x32xf32>, vector<32x64xf32>, vector<12x64xf32> -> vector<12x64xf32>
    %71 = arith.addf %67, %70 : vector<12x64xf32>
    %72 = vector.extract_strided_slice %62 {offsets = [2, 0], sizes = [12, 32], strides = [1, 1]} : vector<14x32xf32> to vector<12x32xf32>
    %c152 = arith.constant 152 : index
    %c0_35 = arith.constant 0 : index
    %73 = vector.load %arg4[%c152, %c0_35] : memref<448x128xf32, #tpu.memory_space<vmem>>, vector<32x64xf32>
    %cst_36 = arith.constant dense<0.000000e+00> : vector<12x64xf32>
    %74 = tpu.matmul %72, %73, %cst_36 {dimension_numbers = #tpu.dot_dimension_numbers<[1], [0], [0], [1], [0, 0, 1, 1], [], []>} : vector<12x32xf32>, vector<32x64xf32>, vector<12x64xf32> -> vector<12x64xf32>
    %75 = arith.addf %71, %74 : vector<12x64xf32>
    %c184 = arith.constant 184 : index
    %c0_37 = arith.constant 0 : index
    %76 = vector.load %arg4[%c184, %c0_37] : memref<448x128xf32, #tpu.memory_space<vmem>>, vector<1x64xf32>
    %77 = vector.broadcast %76 : vector<1x64xf32> to vector<12x64xf32>
    %78 = arith.addf %75, %77 : vector<12x64xf32>
    %cst_38 = arith.constant 0.000000e+00 : f32
    %79 = vector.broadcast %cst_38 : f32 to vector<12x64xf32>
    %80 = arith.maximumf %78, %79 : vector<12x64xf32>
    %81 = vector.extract_strided_slice %80 {offsets = [0, 0], sizes = [10, 64], strides = [1, 1]} : vector<12x64xf32> to vector<10x64xf32>
    %82 = vector.extract_strided_slice %80 {offsets = [1, 0], sizes = [10, 64], strides = [1, 1]} : vector<12x64xf32> to vector<10x64xf32>
    %83 = arith.maximumf %81, %82 : vector<10x64xf32>
    %84 = vector.extract_strided_slice %80 {offsets = [2, 0], sizes = [10, 64], strides = [1, 1]} : vector<12x64xf32> to vector<10x64xf32>
    %85 = arith.maximumf %83, %84 : vector<10x64xf32>
    %c0_39 = arith.constant 0 : index
    %c0_40 = arith.constant 0 : index
    %86 = vector.load %arg8[%c0_39, %c0_40] : memref<10x64xf32, #tpu.memory_space<vmem>>, vector<10x64xf32>
    tpu.vector_store %arg8[%c0_39, %c0_40], %85 {strides = array<i32>} : memref<10x64xf32, #tpu.memory_space<vmem>>, vector<10x64xf32>,
    %c0_41 = arith.constant 0 : index
    %c0_42 = arith.constant 0 : index
    %87 = tpu.strided_load %arg8[%c0_41, %c0_42] {strides = array<i32: 3, 1>} : memref<10x64xf32, #tpu.memory_space<vmem>>, vector<4x64xf32>
    %cst_43 = arith.constant dense<0.000000e+00> : vector<4x128xf32>
    %88 = tpu.matmul %87, %0, %cst_43 {dimension_numbers = #tpu.dot_dimension_numbers<[1], [0], [0], [1], [0, 0, 1, 1], [], []>} : vector<4x64xf32>, vector<64x128xf32>, vector<4x128xf32> -> vector<4x128xf32>
    %89 = vector.broadcast %2 : vector<1x128xf32> to vector<4x128xf32>
    %90 = arith.addf %88, %89 : vector<4x128xf32>
    %c1 = arith.constant 1 : index
    %c0_44 = arith.constant 0 : index
    %c0_45 = arith.constant 0 : index
    %91 = vector.load %arg1[%c1, %c0_44, %c0_45] : memref<2x134x1xf32, #tpu.memory_space<vmem>>, vector<1x134x1xf32>
    %92 = vector.shape_cast %91 : vector<1x134x1xf32> to vector<134x1xf32>
    %cst_46 = arith.constant 0.000000e+00 : f32
    %93 = vector.broadcast %cst_46 : f32 to vector<132x16xf32>
    %94 = vector.extract_strided_slice %92 {offsets = [0, 0], sizes = [132, 1], strides = [1, 1]} : vector<134x1xf32> to vector<132x1xf32>
    %c0_47 = arith.constant 0 : index
    %c0_48 = arith.constant 0 : index
    %95 = vector.load %arg4[%c0_47, %c0_48] : memref<448x128xf32, #tpu.memory_space<vmem>>, vector<1x16xf32>
    %96 = vector.broadcast %94 : vector<132x1xf32> to vector<132x16xf32>
    %97 = vector.broadcast %95 : vector<1x16xf32> to vector<132x16xf32>
    %98 = arith.mulf %96, %97 : vector<132x16xf32>
    %99 = arith.addf %93, %98 : vector<132x16xf32>
    %100 = vector.extract_strided_slice %92 {offsets = [1, 0], sizes = [132, 1], strides = [1, 1]} : vector<134x1xf32> to vector<132x1xf32>
    %c8_49 = arith.constant 8 : index
    %c0_50 = arith.constant 0 : index
    %101 = vector.load %arg4[%c8_49, %c0_50] : memref<448x128xf32, #tpu.memory_space<vmem>>, vector<1x16xf32>
    %102 = vector.broadcast %100 : vector<132x1xf32> to vector<132x16xf32>
    %103 = vector.broadcast %101 : vector<1x16xf32> to vector<132x16xf32>
    %104 = arith.mulf %102, %103 : vector<132x16xf32>
    %105 = arith.addf %99, %104 : vector<132x16xf32>
    %106 = vector.extract_strided_slice %92 {offsets = [2, 0], sizes = [132, 1], strides = [1, 1]} : vector<134x1xf32> to vector<132x1xf32>
    %c16_51 = arith.constant 16 : index
    %c0_52 = arith.constant 0 : index
    %107 = vector.load %arg4[%c16_51, %c0_52] : memref<448x128xf32, #tpu.memory_space<vmem>>, vector<1x16xf32>
    %108 = vector.broadcast %106 : vector<132x1xf32> to vector<132x16xf32>
    %109 = vector.broadcast %107 : vector<1x16xf32> to vector<132x16xf32>
    %110 = arith.mulf %108, %109 : vector<132x16xf32>
    %111 = arith.addf %105, %110 : vector<132x16xf32>
    %c24_53 = arith.constant 24 : index
    %c0_54 = arith.constant 0 : index
    %112 = vector.load %arg4[%c24_53, %c0_54] : memref<448x128xf32, #tpu.memory_space<vmem>>, vector<1x16xf32>
    %113 = vector.broadcast %112 : vector<1x16xf32> to vector<132x16xf32>
    %114 = arith.addf %111, %113 : vector<132x16xf32>
    %cst_55 = arith.constant 0.000000e+00 : f32
    %115 = vector.broadcast %cst_55 : f32 to vector<132x16xf32>
    %116 = arith.maximumf %114, %115 : vector<132x16xf32>
    %117 = vector.extract_strided_slice %116 {offsets = [0, 0], sizes = [130, 16], strides = [1, 1]} : vector<132x16xf32> to vector<130x16xf32>
    %118 = vector.extract_strided_slice %116 {offsets = [1, 0], sizes = [130, 16], strides = [1, 1]} : vector<132x16xf32> to vector<130x16xf32>
    %119 = arith.maximumf %117, %118 : vector<130x16xf32>
    %120 = vector.extract_strided_slice %116 {offsets = [2, 0], sizes = [130, 16], strides = [1, 1]} : vector<132x16xf32> to vector<130x16xf32>
    %121 = arith.maximumf %119, %120 : vector<130x16xf32>
    %c0_56 = arith.constant 0 : index
    %c0_57 = arith.constant 0 : index
    %122 = vector.load %arg6[%c0_56, %c0_57] : memref<130x16xf32, #tpu.memory_space<vmem>>, vector<130x16xf32>
    tpu.vector_store %arg6[%c0_56, %c0_57], %121 {strides = array<i32>} : memref<130x16xf32, #tpu.memory_space<vmem>>, vector<130x16xf32>,
    %c0_58 = arith.constant 0 : index
    %c0_59 = arith.constant 0 : index
    %123 = tpu.strided_load %arg6[%c0_58, %c0_59] {strides = array<i32: 3, 1>} : memref<130x16xf32, #tpu.memory_space<vmem>>, vector<44x16xf32>
    %cst_60 = arith.constant 0.000000e+00 : f32
    %124 = vector.broadcast %cst_60 : f32 to vector<42x32xf32>
    %125 = vector.extract_strided_slice %123 {offsets = [0, 0], sizes = [42, 16], strides = [1, 1]} : vector<44x16xf32> to vector<42x16xf32>
    %c32_61 = arith.constant 32 : index
    %c0_62 = arith.constant 0 : index
    %126 = vector.load %arg4[%c32_61, %c0_62] : memref<448x128xf32, #tpu.memory_space<vmem>>, vector<16x32xf32>
    %cst_63 = arith.constant dense<0.000000e+00> : vector<42x32xf32>
    %127 = tpu.matmul %125, %126, %cst_63 {dimension_numbers = #tpu.dot_dimension_numbers<[1], [0], [0], [1], [0, 0, 1, 1], [], []>} : vector<42x16xf32>, vector<16x32xf32>, vector<42x32xf32> -> vector<42x32xf32>
    %128 = arith.addf %124, %127 : vector<42x32xf32>
    %129 = vector.extract_strided_slice %123 {offsets = [1, 0], sizes = [42, 16], strides = [1, 1]} : vector<44x16xf32> to vector<42x16xf32>
    %c48_64 = arith.constant 48 : index
    %c0_65 = arith.constant 0 : index
    %130 = vector.load %arg4[%c48_64, %c0_65] : memref<448x128xf32, #tpu.memory_space<vmem>>, vector<16x32xf32>
    %cst_66 = arith.constant dense<0.000000e+00> : vector<42x32xf32>
    %131 = tpu.matmul %129, %130, %cst_66 {dimension_numbers = #tpu.dot_dimension_numbers<[1], [0], [0], [1], [0, 0, 1, 1], [], []>} : vector<42x16xf32>, vector<16x32xf32>, vector<42x32xf32> -> vector<42x32xf32>
    %132 = arith.addf %128, %131 : vector<42x32xf32>
    %133 = vector.extract_strided_slice %123 {offsets = [2, 0], sizes = [42, 16], strides = [1, 1]} : vector<44x16xf32> to vector<42x16xf32>
    %c64_67 = arith.constant 64 : index
    %c0_68 = arith.constant 0 : index
    %134 = vector.load %arg4[%c64_67, %c0_68] : memref<448x128xf32, #tpu.memory_space<vmem>>, vector<16x32xf32>
    %cst_69 = arith.constant dense<0.000000e+00> : vector<42x32xf32>
    %135 = tpu.matmul %133, %134, %cst_69 {dimension_numbers = #tpu.dot_dimension_numbers<[1], [0], [0], [1], [0, 0, 1, 1], [], []>} : vector<42x16xf32>, vector<16x32xf32>, vector<42x32xf32> -> vector<42x32xf32>
    %136 = arith.addf %132, %135 : vector<42x32xf32>
    %c80_70 = arith.constant 80 : index
    %c0_71 = arith.constant 0 : index
    %137 = vector.load %arg4[%c80_70, %c0_71] : memref<448x128xf32, #tpu.memory_space<vmem>>, vector<1x32xf32>
    %138 = vector.broadcast %137 : vector<1x32xf32> to vector<42x32xf32>
    %139 = arith.addf %136, %138 : vector<42x32xf32>
    %cst_72 = arith.constant 0.000000e+00 : f32
    %140 = vector.broadcast %cst_72 : f32 to vector<42x32xf32>
    %141 = arith.maximumf %139, %140 : vector<42x32xf32>
    %142 = vector.extract_strided_slice %141 {offsets = [0, 0], sizes = [40, 32], strides = [1, 1]} : vector<42x32xf32> to vector<40x32xf32>
    %143 = vector.extract_strided_slice %141 {offsets = [1, 0], sizes = [40, 32], strides = [1, 1]} : vector<42x32xf32> to vector<40x32xf32>
    %144 = arith.maximumf %142, %143 : vector<40x32xf32>
    %145 = vector.extract_strided_slice %141 {offsets = [2, 0], sizes = [40, 32], strides = [1, 1]} : vector<42x32xf32> to vector<40x32xf32>
    %146 = arith.maximumf %144, %145 : vector<40x32xf32>
    %c0_73 = arith.constant 0 : index
    %c0_74 = arith.constant 0 : index
    %147 = vector.load %arg7[%c0_73, %c0_74] : memref<40x32xf32, #tpu.memory_space<vmem>>, vector<40x32xf32>
    tpu.vector_store %arg7[%c0_73, %c0_74], %146 {strides = array<i32>} : memref<40x32xf32, #tpu.memory_space<vmem>>, vector<40x32xf32>,
    %c0_75 = arith.constant 0 : index
    %c0_76 = arith.constant 0 : index
    %148 = tpu.strided_load %arg7[%c0_75, %c0_76] {strides = array<i32: 3, 1>} : memref<40x32xf32, #tpu.memory_space<vmem>>, vector<14x32xf32>
    %cst_77 = arith.constant 0.000000e+00 : f32
    %149 = vector.broadcast %cst_77 : f32 to vector<12x64xf32>
    %150 = vector.extract_strided_slice %148 {offsets = [0, 0], sizes = [12, 32], strides = [1, 1]} : vector<14x32xf32> to vector<12x32xf32>
    %c88_78 = arith.constant 88 : index
    %c0_79 = arith.constant 0 : index
    %151 = vector.load %arg4[%c88_78, %c0_79] : memref<448x128xf32, #tpu.memory_space<vmem>>, vector<32x64xf32>
    %cst_80 = arith.constant dense<0.000000e+00> : vector<12x64xf32>
    %152 = tpu.matmul %150, %151, %cst_80 {dimension_numbers = #tpu.dot_dimension_numbers<[1], [0], [0], [1], [0, 0, 1, 1], [], []>} : vector<12x32xf32>, vector<32x64xf32>, vector<12x64xf32> -> vector<12x64xf32>
    %153 = arith.addf %149, %152 : vector<12x64xf32>
    %154 = vector.extract_strided_slice %148 {offsets = [1, 0], sizes = [12, 32], strides = [1, 1]} : vector<14x32xf32> to vector<12x32xf32>
    %c120_81 = arith.constant 120 : index
    %c0_82 = arith.constant 0 : index
    %155 = vector.load %arg4[%c120_81, %c0_82] : memref<448x128xf32, #tpu.memory_space<vmem>>, vector<32x64xf32>
    %cst_83 = arith.constant dense<0.000000e+00> : vector<12x64xf32>
    %156 = tpu.matmul %154, %155, %cst_83 {dimension_numbers = #tpu.dot_dimension_numbers<[1], [0], [0], [1], [0, 0, 1, 1], [], []>} : vector<12x32xf32>, vector<32x64xf32>, vector<12x64xf32> -> vector<12x64xf32>
    %157 = arith.addf %153, %156 : vector<12x64xf32>
    %158 = vector.extract_strided_slice %148 {offsets = [2, 0], sizes = [12, 32], strides = [1, 1]} : vector<14x32xf32> to vector<12x32xf32>
    %c152_84 = arith.constant 152 : index
    %c0_85 = arith.constant 0 : index
    %159 = vector.load %arg4[%c152_84, %c0_85] : memref<448x128xf32, #tpu.memory_space<vmem>>, vector<32x64xf32>
    %cst_86 = arith.constant dense<0.000000e+00> : vector<12x64xf32>
    %160 = tpu.matmul %158, %159, %cst_86 {dimension_numbers = #tpu.dot_dimension_numbers<[1], [0], [0], [1], [0, 0, 1, 1], [], []>} : vector<12x32xf32>, vector<32x64xf32>, vector<12x64xf32> -> vector<12x64xf32>
    %161 = arith.addf %157, %160 : vector<12x64xf32>
    %c184_87 = arith.constant 184 : index
    %c0_88 = arith.constant 0 : index
    %162 = vector.load %arg4[%c184_87, %c0_88] : memref<448x128xf32, #tpu.memory_space<vmem>>, vector<1x64xf32>
    %163 = vector.broadcast %162 : vector<1x64xf32> to vector<12x64xf32>
    %164 = arith.addf %161, %163 : vector<12x64xf32>
    %cst_89 = arith.constant 0.000000e+00 : f32
    %165 = vector.broadcast %cst_89 : f32 to vector<12x64xf32>
    %166 = arith.maximumf %164, %165 : vector<12x64xf32>
    %167 = vector.extract_strided_slice %166 {offsets = [0, 0], sizes = [10, 64], strides = [1, 1]} : vector<12x64xf32> to vector<10x64xf32>
    %168 = vector.extract_strided_slice %166 {offsets = [1, 0], sizes = [10, 64], strides = [1, 1]} : vector<12x64xf32> to vector<10x64xf32>
    %169 = arith.maximumf %167, %168 : vector<10x64xf32>
    %170 = vector.extract_strided_slice %166 {offsets = [2, 0], sizes = [10, 64], strides = [1, 1]} : vector<12x64xf32> to vector<10x64xf32>
    %171 = arith.maximumf %169, %170 : vector<10x64xf32>
    %c0_90 = arith.constant 0 : index
    %c0_91 = arith.constant 0 : index
    %172 = vector.load %arg8[%c0_90, %c0_91] : memref<10x64xf32, #tpu.memory_space<vmem>>, vector<10x64xf32>
    tpu.vector_store %arg8[%c0_90, %c0_91], %171 {strides = array<i32>} : memref<10x64xf32, #tpu.memory_space<vmem>>, vector<10x64xf32>,
    %c0_92 = arith.constant 0 : index
    %c0_93 = arith.constant 0 : index
    %173 = tpu.strided_load %arg8[%c0_92, %c0_93] {strides = array<i32: 3, 1>} : memref<10x64xf32, #tpu.memory_space<vmem>>, vector<4x64xf32>
    %cst_94 = arith.constant dense<0.000000e+00> : vector<4x128xf32>
    %174 = tpu.matmul %173, %0, %cst_94 {dimension_numbers = #tpu.dot_dimension_numbers<[1], [0], [0], [1], [0, 0, 1, 1], [], []>} : vector<4x64xf32>, vector<64x128xf32>, vector<4x128xf32> -> vector<4x128xf32>
    %175 = vector.broadcast %2 : vector<1x128xf32> to vector<4x128xf32>
    %176 = arith.addf %174, %175 : vector<4x128xf32>
    %177 = vector.extract_strided_slice %90 {offsets = [0, 0], sizes = [1, 128], strides = [1, 1]} : vector<4x128xf32> to vector<1x128xf32>
    %178 = vector.extract_strided_slice %176 {offsets = [0, 0], sizes = [1, 128], strides = [1, 1]} : vector<4x128xf32> to vector<1x128xf32>
    %179 = tpu.concatenate %177, %178 in 0 : vector<1x128xf32>, vector<1x128xf32> -> vector<2x128xf32>
    %180 = vector.extract_strided_slice %90 {offsets = [1, 0], sizes = [1, 128], strides = [1, 1]} : vector<4x128xf32> to vector<1x128xf32>
    %181 = vector.extract_strided_slice %176 {offsets = [1, 0], sizes = [1, 128], strides = [1, 1]} : vector<4x128xf32> to vector<1x128xf32>
    %182 = tpu.concatenate %180, %181 in 0 : vector<1x128xf32>, vector<1x128xf32> -> vector<2x128xf32>
    %183 = vector.extract_strided_slice %90 {offsets = [2, 0], sizes = [1, 128], strides = [1, 1]} : vector<4x128xf32> to vector<1x128xf32>
    %184 = vector.extract_strided_slice %176 {offsets = [2, 0], sizes = [1, 128], strides = [1, 1]} : vector<4x128xf32> to vector<1x128xf32>
    %185 = tpu.concatenate %183, %184 in 0 : vector<1x128xf32>, vector<1x128xf32> -> vector<2x128xf32>
    %186 = vector.extract_strided_slice %90 {offsets = [3, 0], sizes = [1, 128], strides = [1, 1]} : vector<4x128xf32> to vector<1x128xf32>
    %187 = vector.extract_strided_slice %176 {offsets = [3, 0], sizes = [1, 128], strides = [1, 1]} : vector<4x128xf32> to vector<1x128xf32>
    %188 = tpu.concatenate %186, %187 in 0 : vector<1x128xf32>, vector<1x128xf32> -> vector<2x128xf32>
    %c0_95 = arith.constant 0 : index
    %c0_96 = arith.constant 0 : index
    %c0_97 = arith.constant 0 : index
    %189 = vector.load %arg2[%c0_95, %c0_96, %c0_97] : memref<2x2x32xf32, #tpu.memory_space<vmem>>, vector<1x2x32xf32>
    %190 = vector.shape_cast %189 : vector<1x2x32xf32> to vector<2x32xf32>
    %c0_98 = arith.constant 0 : index
    %c0_99 = arith.constant 0 : index
    %c0_100 = arith.constant 0 : index
    %191 = vector.load %arg3[%c0_98, %c0_99, %c0_100] : memref<2x2x32xf32, #tpu.memory_space<vmem>>, vector<1x2x32xf32>
    %192 = vector.shape_cast %191 : vector<1x2x32xf32> to vector<2x32xf32>
    %c1_101 = arith.constant 1 : index
    %c0_102 = arith.constant 0 : index
    %c0_103 = arith.constant 0 : index
    %193 = vector.load %arg2[%c1_101, %c0_102, %c0_103] : memref<2x2x32xf32, #tpu.memory_space<vmem>>, vector<1x2x32xf32>
    %194 = vector.shape_cast %193 : vector<1x2x32xf32> to vector<2x32xf32>
    %c1_104 = arith.constant 1 : index
    %c0_105 = arith.constant 0 : index
    %c0_106 = arith.constant 0 : index
    %195 = vector.load %arg3[%c1_104, %c0_105, %c0_106] : memref<2x2x32xf32, #tpu.memory_space<vmem>>, vector<1x2x32xf32>
    %196 = vector.shape_cast %195 : vector<1x2x32xf32> to vector<2x32xf32>
    %cst_107 = arith.constant dense<0.000000e+00> : vector<2x128xf32>
    %197 = tpu.matmul %190, %1, %cst_107 {dimension_numbers = #tpu.dot_dimension_numbers<[1], [0], [0], [1], [0, 0, 1, 1], [], []>} : vector<2x32xf32>, vector<32x128xf32>, vector<2x128xf32> -> vector<2x128xf32>
    %198 = arith.addf %179, %197 : vector<2x128xf32>
    %199 = arith.negf %198 : vector<2x128xf32>
    %200 = math.exp %199 : vector<2x128xf32>
    %cst_108 = arith.constant 1.000000e+00 : f32
    %201 = vector.broadcast %cst_108 : f32 to vector<2x128xf32>
    %202 = arith.addf %201, %200 : vector<2x128xf32>
    %203 = arith.divf %201, %202 : vector<2x128xf32>
    %204 = vector.extract_strided_slice %203 {offsets = [0, 0], sizes = [2, 32], strides = [1, 1]} : vector<2x128xf32> to vector<2x32xf32>
    %205 = vector.extract_strided_slice %203 {offsets = [0, 32], sizes = [2, 32], strides = [1, 1]} : vector<2x128xf32> to vector<2x32xf32>
    %206 = vector.extract_strided_slice %203 {offsets = [0, 96], sizes = [2, 32], strides = [1, 1]} : vector<2x128xf32> to vector<2x32xf32>
    %207 = vector.extract_strided_slice %198 {offsets = [0, 64], sizes = [2, 32], strides = [1, 1]} : vector<2x128xf32> to vector<2x32xf32>
    %208 = math.tanh %207 : vector<2x32xf32>
    %209 = arith.mulf %205, %192 : vector<2x32xf32>
    %210 = arith.mulf %204, %208 : vector<2x32xf32>
    %211 = arith.addf %209, %210 : vector<2x32xf32>
    %212 = math.tanh %211 : vector<2x32xf32>
    %213 = arith.mulf %206, %212 : vector<2x32xf32>
    %cst_109 = arith.constant dense<0.000000e+00> : vector<2x128xf32>
    %214 = tpu.matmul %213, %1, %cst_109 {dimension_numbers = #tpu.dot_dimension_numbers<[1], [0], [0], [1], [0, 0, 1, 1], [], []>} : vector<2x32xf32>, vector<32x128xf32>, vector<2x128xf32> -> vector<2x128xf32>
    %215 = arith.addf %182, %214 : vector<2x128xf32>
    %216 = arith.negf %215 : vector<2x128xf32>
    %217 = math.exp %216 : vector<2x128xf32>
    %cst_110 = arith.constant 1.000000e+00 : f32
    %218 = vector.broadcast %cst_110 : f32 to vector<2x128xf32>
    %219 = arith.addf %218, %217 : vector<2x128xf32>
    %220 = arith.divf %218, %219 : vector<2x128xf32>
    %221 = vector.extract_strided_slice %220 {offsets = [0, 0], sizes = [2, 32], strides = [1, 1]} : vector<2x128xf32> to vector<2x32xf32>
    %222 = vector.extract_strided_slice %220 {offsets = [0, 32], sizes = [2, 32], strides = [1, 1]} : vector<2x128xf32> to vector<2x32xf32>
    %223 = vector.extract_strided_slice %220 {offsets = [0, 96], sizes = [2, 32], strides = [1, 1]} : vector<2x128xf32> to vector<2x32xf32>
    %224 = vector.extract_strided_slice %215 {offsets = [0, 64], sizes = [2, 32], strides = [1, 1]} : vector<2x128xf32> to vector<2x32xf32>
    %225 = math.tanh %224 : vector<2x32xf32>
    %226 = arith.mulf %222, %211 : vector<2x32xf32>
    %227 = arith.mulf %221, %225 : vector<2x32xf32>
    %228 = arith.addf %226, %227 : vector<2x32xf32>
    %229 = math.tanh %228 : vector<2x32xf32>
    %230 = arith.mulf %223, %229 : vector<2x32xf32>
    %231 = tpu.concatenate %213, %194 in 1 : vector<2x32xf32>, vector<2x32xf32> -> vector<2x64xf32>
    %cst_111 = arith.constant dense<0.000000e+00> : vector<2x128xf32>
    %232 = tpu.matmul %231, %3, %cst_111 {dimension_numbers = #tpu.dot_dimension_numbers<[1], [0], [0], [1], [0, 0, 1, 1], [], []>} : vector<2x64xf32>, vector<64x128xf32>, vector<2x128xf32> -> vector<2x128xf32>
    %233 = vector.broadcast %4 : vector<1x128xf32> to vector<2x128xf32>
    %234 = arith.addf %232, %233 : vector<2x128xf32>
    %235 = arith.negf %234 : vector<2x128xf32>
    %236 = math.exp %235 : vector<2x128xf32>
    %cst_112 = arith.constant 1.000000e+00 : f32
    %237 = vector.broadcast %cst_112 : f32 to vector<2x128xf32>
    %238 = arith.addf %237, %236 : vector<2x128xf32>
    %239 = arith.divf %237, %238 : vector<2x128xf32>
    %240 = vector.extract_strided_slice %239 {offsets = [0, 0], sizes = [2, 32], strides = [1, 1]} : vector<2x128xf32> to vector<2x32xf32>
    %241 = vector.extract_strided_slice %239 {offsets = [0, 32], sizes = [2, 32], strides = [1, 1]} : vector<2x128xf32> to vector<2x32xf32>
    %242 = vector.extract_strided_slice %239 {offsets = [0, 96], sizes = [2, 32], strides = [1, 1]} : vector<2x128xf32> to vector<2x32xf32>
    %243 = vector.extract_strided_slice %234 {offsets = [0, 64], sizes = [2, 32], strides = [1, 1]} : vector<2x128xf32> to vector<2x32xf32>
    %244 = math.tanh %243 : vector<2x32xf32>
    %245 = arith.mulf %241, %196 : vector<2x32xf32>
    %246 = arith.mulf %240, %244 : vector<2x32xf32>
    %247 = arith.addf %245, %246 : vector<2x32xf32>
    %248 = math.tanh %247 : vector<2x32xf32>
    %249 = arith.mulf %242, %248 : vector<2x32xf32>
    %cst_113 = arith.constant dense<0.000000e+00> : vector<2x128xf32>
    %250 = tpu.matmul %230, %1, %cst_113 {dimension_numbers = #tpu.dot_dimension_numbers<[1], [0], [0], [1], [0, 0, 1, 1], [], []>} : vector<2x32xf32>, vector<32x128xf32>, vector<2x128xf32> -> vector<2x128xf32>
    %251 = arith.addf %185, %250 : vector<2x128xf32>
    %252 = arith.negf %251 : vector<2x128xf32>
    %253 = math.exp %252 : vector<2x128xf32>
    %cst_114 = arith.constant 1.000000e+00 : f32
    %254 = vector.broadcast %cst_114 : f32 to vector<2x128xf32>
    %255 = arith.addf %254, %253 : vector<2x128xf32>
    %256 = arith.divf %254, %255 : vector<2x128xf32>
    %257 = vector.extract_strided_slice %256 {offsets = [0, 0], sizes = [2, 32], strides = [1, 1]} : vector<2x128xf32> to vector<2x32xf32>
    %258 = vector.extract_strided_slice %256 {offsets = [0, 32], sizes = [2, 32], strides = [1, 1]} : vector<2x128xf32> to vector<2x32xf32>
    %259 = vector.extract_strided_slice %256 {offsets = [0, 96], sizes = [2, 32], strides = [1, 1]} : vector<2x128xf32> to vector<2x32xf32>
    %260 = vector.extract_strided_slice %251 {offsets = [0, 64], sizes = [2, 32], strides = [1, 1]} : vector<2x128xf32> to vector<2x32xf32>
    %261 = math.tanh %260 : vector<2x32xf32>
    %262 = arith.mulf %258, %228 : vector<2x32xf32>
    %263 = arith.mulf %257, %261 : vector<2x32xf32>
    %264 = arith.addf %262, %263 : vector<2x32xf32>
    %265 = math.tanh %264 : vector<2x32xf32>
    %266 = arith.mulf %259, %265 : vector<2x32xf32>
    %267 = tpu.concatenate %230, %249 in 1 : vector<2x32xf32>, vector<2x32xf32> -> vector<2x64xf32>
    %cst_115 = arith.constant dense<0.000000e+00> : vector<2x128xf32>
    %268 = tpu.matmul %267, %3, %cst_115 {dimension_numbers = #tpu.dot_dimension_numbers<[1], [0], [0], [1], [0, 0, 1, 1], [], []>} : vector<2x64xf32>, vector<64x128xf32>, vector<2x128xf32> -> vector<2x128xf32>
    %269 = vector.broadcast %4 : vector<1x128xf32> to vector<2x128xf32>
    %270 = arith.addf %268, %269 : vector<2x128xf32>
    %271 = arith.negf %270 : vector<2x128xf32>
    %272 = math.exp %271 : vector<2x128xf32>
    %cst_116 = arith.constant 1.000000e+00 : f32
    %273 = vector.broadcast %cst_116 : f32 to vector<2x128xf32>
    %274 = arith.addf %273, %272 : vector<2x128xf32>
    %275 = arith.divf %273, %274 : vector<2x128xf32>
    %276 = vector.extract_strided_slice %275 {offsets = [0, 0], sizes = [2, 32], strides = [1, 1]} : vector<2x128xf32> to vector<2x32xf32>
    %277 = vector.extract_strided_slice %275 {offsets = [0, 32], sizes = [2, 32], strides = [1, 1]} : vector<2x128xf32> to vector<2x32xf32>
    %278 = vector.extract_strided_slice %275 {offsets = [0, 96], sizes = [2, 32], strides = [1, 1]} : vector<2x128xf32> to vector<2x32xf32>
    %279 = vector.extract_strided_slice %270 {offsets = [0, 64], sizes = [2, 32], strides = [1, 1]} : vector<2x128xf32> to vector<2x32xf32>
    %280 = math.tanh %279 : vector<2x32xf32>
    %281 = arith.mulf %277, %247 : vector<2x32xf32>
    %282 = arith.mulf %276, %280 : vector<2x32xf32>
    %283 = arith.addf %281, %282 : vector<2x32xf32>
    %284 = math.tanh %283 : vector<2x32xf32>
    %285 = arith.mulf %278, %284 : vector<2x32xf32>
    %cst_117 = arith.constant dense<0.000000e+00> : vector<2x128xf32>
    %286 = tpu.matmul %266, %1, %cst_117 {dimension_numbers = #tpu.dot_dimension_numbers<[1], [0], [0], [1], [0, 0, 1, 1], [], []>} : vector<2x32xf32>, vector<32x128xf32>, vector<2x128xf32> -> vector<2x128xf32>
    %287 = arith.addf %188, %286 : vector<2x128xf32>
    %288 = arith.negf %287 : vector<2x128xf32>
    %289 = math.exp %288 : vector<2x128xf32>
    %cst_118 = arith.constant 1.000000e+00 : f32
    %290 = vector.broadcast %cst_118 : f32 to vector<2x128xf32>
    %291 = arith.addf %290, %289 : vector<2x128xf32>
    %292 = arith.divf %290, %291 : vector<2x128xf32>
    %293 = vector.extract_strided_slice %292 {offsets = [0, 0], sizes = [2, 32], strides = [1, 1]} : vector<2x128xf32> to vector<2x32xf32>
    %294 = vector.extract_strided_slice %292 {offsets = [0, 32], sizes = [2, 32], strides = [1, 1]} : vector<2x128xf32> to vector<2x32xf32>
    %295 = vector.extract_strided_slice %292 {offsets = [0, 96], sizes = [2, 32], strides = [1, 1]} : vector<2x128xf32> to vector<2x32xf32>
    %296 = vector.extract_strided_slice %287 {offsets = [0, 64], sizes = [2, 32], strides = [1, 1]} : vector<2x128xf32> to vector<2x32xf32>
    %297 = math.tanh %296 : vector<2x32xf32>
    %298 = arith.mulf %294, %264 : vector<2x32xf32>
    %299 = arith.mulf %293, %297 : vector<2x32xf32>
    %300 = arith.addf %298, %299 : vector<2x32xf32>
    %301 = math.tanh %300 : vector<2x32xf32>
    %302 = arith.mulf %295, %301 : vector<2x32xf32>
    %303 = tpu.concatenate %266, %285 in 1 : vector<2x32xf32>, vector<2x32xf32> -> vector<2x64xf32>
    %cst_119 = arith.constant dense<0.000000e+00> : vector<2x128xf32>
    %304 = tpu.matmul %303, %3, %cst_119 {dimension_numbers = #tpu.dot_dimension_numbers<[1], [0], [0], [1], [0, 0, 1, 1], [], []>} : vector<2x64xf32>, vector<64x128xf32>, vector<2x128xf32> -> vector<2x128xf32>
    %305 = vector.broadcast %4 : vector<1x128xf32> to vector<2x128xf32>
    %306 = arith.addf %304, %305 : vector<2x128xf32>
    %307 = arith.negf %306 : vector<2x128xf32>
    %308 = math.exp %307 : vector<2x128xf32>
    %cst_120 = arith.constant 1.000000e+00 : f32
    %309 = vector.broadcast %cst_120 : f32 to vector<2x128xf32>
    %310 = arith.addf %309, %308 : vector<2x128xf32>
    %311 = arith.divf %309, %310 : vector<2x128xf32>
    %312 = vector.extract_strided_slice %311 {offsets = [0, 0], sizes = [2, 32], strides = [1, 1]} : vector<2x128xf32> to vector<2x32xf32>
    %313 = vector.extract_strided_slice %311 {offsets = [0, 32], sizes = [2, 32], strides = [1, 1]} : vector<2x128xf32> to vector<2x32xf32>
    %314 = vector.extract_strided_slice %311 {offsets = [0, 96], sizes = [2, 32], strides = [1, 1]} : vector<2x128xf32> to vector<2x32xf32>
    %315 = vector.extract_strided_slice %306 {offsets = [0, 64], sizes = [2, 32], strides = [1, 1]} : vector<2x128xf32> to vector<2x32xf32>
    %316 = math.tanh %315 : vector<2x32xf32>
    %317 = arith.mulf %313, %283 : vector<2x32xf32>
    %318 = arith.mulf %312, %316 : vector<2x32xf32>
    %319 = arith.addf %317, %318 : vector<2x32xf32>
    %320 = math.tanh %319 : vector<2x32xf32>
    %321 = arith.mulf %314, %320 : vector<2x32xf32>
    %322 = tpu.concatenate %302, %321 in 1 : vector<2x32xf32>, vector<2x32xf32> -> vector<2x64xf32>
    %cst_121 = arith.constant dense<0.000000e+00> : vector<2x128xf32>
    %323 = tpu.matmul %322, %3, %cst_121 {dimension_numbers = #tpu.dot_dimension_numbers<[1], [0], [0], [1], [0, 0, 1, 1], [], []>} : vector<2x64xf32>, vector<64x128xf32>, vector<2x128xf32> -> vector<2x128xf32>
    %324 = vector.broadcast %4 : vector<1x128xf32> to vector<2x128xf32>
    %325 = arith.addf %323, %324 : vector<2x128xf32>
    %326 = arith.negf %325 : vector<2x128xf32>
    %327 = math.exp %326 : vector<2x128xf32>
    %cst_122 = arith.constant 1.000000e+00 : f32
    %328 = vector.broadcast %cst_122 : f32 to vector<2x128xf32>
    %329 = arith.addf %328, %327 : vector<2x128xf32>
    %330 = arith.divf %328, %329 : vector<2x128xf32>
    %331 = vector.extract_strided_slice %330 {offsets = [0, 0], sizes = [2, 32], strides = [1, 1]} : vector<2x128xf32> to vector<2x32xf32>
    %332 = vector.extract_strided_slice %330 {offsets = [0, 32], sizes = [2, 32], strides = [1, 1]} : vector<2x128xf32> to vector<2x32xf32>
    %333 = vector.extract_strided_slice %330 {offsets = [0, 96], sizes = [2, 32], strides = [1, 1]} : vector<2x128xf32> to vector<2x32xf32>
    %334 = vector.extract_strided_slice %325 {offsets = [0, 64], sizes = [2, 32], strides = [1, 1]} : vector<2x128xf32> to vector<2x32xf32>
    %335 = math.tanh %334 : vector<2x32xf32>
    %336 = arith.mulf %332, %319 : vector<2x32xf32>
    %337 = arith.mulf %331, %335 : vector<2x32xf32>
    %338 = arith.addf %336, %337 : vector<2x32xf32>
    %339 = math.tanh %338 : vector<2x32xf32>
    %340 = arith.mulf %333, %339 : vector<2x32xf32>
    %c368 = arith.constant 368 : index
    %c0_123 = arith.constant 0 : index
    %341 = vector.load %arg4[%c368, %c0_123] : memref<448x128xf32, #tpu.memory_space<vmem>>, vector<32x16xf32>
    %cst_124 = arith.constant dense<0.000000e+00> : vector<2x16xf32>
    %342 = tpu.matmul %340, %341, %cst_124 {dimension_numbers = #tpu.dot_dimension_numbers<[1], [0], [0], [1], [0, 0, 1, 1], [], []>} : vector<2x32xf32>, vector<32x16xf32>, vector<2x16xf32> -> vector<2x16xf32>
    %c400 = arith.constant 400 : index
    %c0_125 = arith.constant 0 : index
    %343 = vector.load %arg4[%c400, %c0_125] : memref<448x128xf32, #tpu.memory_space<vmem>>, vector<1x16xf32>
    %344 = vector.broadcast %343 : vector<1x16xf32> to vector<2x16xf32>
    %345 = arith.addf %342, %344 : vector<2x16xf32>
    %cst_126 = arith.constant 0.000000e+00 : f32
    %346 = vector.broadcast %cst_126 : f32 to vector<2x16xf32>
    %347 = arith.maximumf %345, %346 : vector<2x16xf32>
    %c408 = arith.constant 408 : index
    %c0_127 = arith.constant 0 : index
    %348 = vector.load %arg4[%c408, %c0_127] : memref<448x128xf32, #tpu.memory_space<vmem>>, vector<16x8xf32>
    %cst_128 = arith.constant dense<0.000000e+00> : vector<2x8xf32>
    %349 = tpu.matmul %347, %348, %cst_128 {dimension_numbers = #tpu.dot_dimension_numbers<[1], [0], [0], [1], [0, 0, 1, 1], [], []>} : vector<2x16xf32>, vector<16x8xf32>, vector<2x8xf32> -> vector<2x8xf32>
    %c424 = arith.constant 424 : index
    %c0_129 = arith.constant 0 : index
    %350 = vector.load %arg4[%c424, %c0_129] : memref<448x128xf32, #tpu.memory_space<vmem>>, vector<1x8xf32>
    %351 = vector.broadcast %350 : vector<1x8xf32> to vector<2x8xf32>
    %352 = arith.addf %349, %351 : vector<2x8xf32>
    %cst_130 = arith.constant 0.000000e+00 : f32
    %353 = vector.broadcast %cst_130 : f32 to vector<2x8xf32>
    %354 = arith.maximumf %352, %353 : vector<2x8xf32>
    %c432 = arith.constant 432 : index
    %c0_131 = arith.constant 0 : index
    %355 = vector.load %arg4[%c432, %c0_131] : memref<448x128xf32, #tpu.memory_space<vmem>>, vector<8x3xf32>
    %cst_132 = arith.constant dense<0.000000e+00> : vector<2x3xf32>
    %356 = tpu.matmul %354, %355, %cst_132 {dimension_numbers = #tpu.dot_dimension_numbers<[1], [0], [0], [1], [0, 0, 1, 1], [], []>} : vector<2x8xf32>, vector<8x3xf32>, vector<2x3xf32> -> vector<2x3xf32>
    %c440 = arith.constant 440 : index
    %c0_133 = arith.constant 0 : index
    %357 = vector.load %arg4[%c440, %c0_133] : memref<448x128xf32, #tpu.memory_space<vmem>>, vector<1x3xf32>
    %358 = vector.broadcast %357 : vector<1x3xf32> to vector<2x3xf32>
    %359 = arith.addf %356, %358 : vector<2x3xf32>
    %c0_134 = arith.constant 0 : index
    %c0_135 = arith.constant 0 : index
    %360 = vector.load %arg5[%c0_134, %c0_135] : memref<2x3xf32, #tpu.memory_space<vmem>>, vector<2x3xf32>
    tpu.vector_store %arg5[%c0_134, %c0_135], %359 {strides = array<i32>} : memref<2x3xf32, #tpu.memory_space<vmem>>, vector<2x3xf32>,
    return
  }
  func.func @transform_0(%arg0: i32) -> (i32, i32, i32) {
    %c0_i32 = arith.constant 0 : i32
    %c0_i32_0 = arith.constant 0 : i32
    %c0_i32_1 = arith.constant 0 : i32
    %c0_i32_2 = arith.constant 0 : i32
    return %c0_i32, %c0_i32_0, %c0_i32_1 : i32, i32, i32
  }
  func.func @transform_1(%arg0: i32) -> (i32, i32, i32) {
    %c0_i32 = arith.constant 0 : i32
    %c0_i32_0 = arith.constant 0 : i32
    %c0_i32_1 = arith.constant 0 : i32
    %c0_i32_2 = arith.constant 0 : i32
    return %c0_i32, %c0_i32_0, %c0_i32_1 : i32, i32, i32
  }
  func.func @transform_2(%arg0: i32) -> (i32, i32, i32) {
    %c0_i32 = arith.constant 0 : i32
    %c0_i32_0 = arith.constant 0 : i32
    %c0_i32_1 = arith.constant 0 : i32
    %c0_i32_2 = arith.constant 0 : i32
    return %c0_i32, %c0_i32_0, %c0_i32_1 : i32, i32, i32
  }
  func.func @transform_3(%arg0: i32) -> (i32, i32) {
    %c0_i32 = arith.constant 0 : i32
    %c0_i32_0 = arith.constant 0 : i32
    %c0_i32_1 = arith.constant 0 : i32
    return %c0_i32, %c0_i32_0 : i32, i32
  }
  func.func @transform_4(%arg0: i32) -> (i32, i32) {
    %c0_i32 = arith.constant 0 : i32
    %c0_i32_0 = arith.constant 0 : i32
    %c0_i32_1 = arith.constant 0 : i32
    return %c0_i32, %c0_i32_0 : i32, i32
  }
}

</mosaic_0001>

<llo_original>
// kernel: lstm1dcnn_forward.1
$region0: #{lstm1dcnn_forward.1}
  #allocation0 [shape = 'u32[]', space=smem, size = 0x4, offset = 0x4, fixed_abs, tag = 'smem constant byte address 0x4 - core index']
  #allocation1 [shape = 'u32[72,128]{1,0:T(1,128)}', space=vmem, size = 0x9000, scoped, tag = 'internal scratch']
  #allocation2 [shape = 'f32[130,16]{1,0:T(8,128)}', space=vmem, size = 0x11000, scoped, tag = 'scratch operand']
  #allocation3 [shape = 'f32[40,32]{1,0:T(8,128)}', space=vmem, size = 0x5000, scoped, tag = 'scratch operand']
  #allocation4 [shape = 'f32[10,64]{1,0:T(8,128)}', space=vmem, size = 0x2000, scoped, tag = 'scratch operand']
  %s0 = inlined_call_operand.vmem [shape: f32[2,134,1], index: 0, kind: input, shape index: {}]
  %s1 = inlined_call_operand.vmem [shape: f32[2,2,32], index: 1, kind: input, shape index: {}]
  %s2 = inlined_call_operand.vmem [shape: f32[2,2,32], index: 2, kind: input, shape index: {}]
  %s3 = inlined_call_operand.vmem [shape: f32[448,128], index: 3, kind: input, shape index: {}]
  %s4 = inlined_call_operand.hbm [shape: f32[2,3], index: 4, kind: output, shape index: {}]
  %s5 = sld [smem:[#allocation0]]
  $region26: #{lstm1dcnn_forward.1} parent=0
    _
  %s7 = ssub.s32 1, %s5
  %s8 = scalar_select 0, %s7, %s5
  $region1: #{lstm1dcnn_forward.1} parent=0
    #allocation5 [shape = 'u8[1024]{0}', space=vmem, size = 0x400, scoped, tag = 'output window, operand 0, single buffered']
    #allocation6 [shape = 's32[1]{0}', space=sflag, size = 0x4, scoped, tag = 'scoped memory for lstm1dcnn_forward.1']
    %9 = vsyncpa [#allocation6], 0
    // Predicated region
    $region2: #{lstm1dcnn_forward.1} parent=1 // pred_check
      _
    $region3: #{lstm1dcnn_forward.1} parent=1 // pred_check_branch
      %11 = sbr.rel (0) target = $region5
    $region4: #{lstm1dcnn_forward.1} parent=1 // pred_region
      _
    $region5: #{lstm1dcnn_forward.1} parent=1 // pred_fallthru
      _
    // Predicated region
    $region6: #{lstm1dcnn_forward.1} parent=1 // pred_check
      _
    $region7: #{lstm1dcnn_forward.1} parent=1 // pred_check_branch
      %13 = sbr.rel (0) target = $region9
    $region8: #{lstm1dcnn_forward.1} parent=1 // pred_region
      _
    $region9: #{lstm1dcnn_forward.1} parent=1 // pred_fallthru
      _
    // Predicated region
    $region10: #{lstm1dcnn_forward.1} parent=1 // pred_check
      _
    $region11: #{lstm1dcnn_forward.1} parent=1 // pred_check_branch
      %15 = sbr.rel (0) target = $region13
    $region12: #{lstm1dcnn_forward.1} parent=1 // pred_region
      _
    $region13: #{lstm1dcnn_forward.1} parent=1 // pred_fallthru
      _
    // Predicated region
    $region14: #{lstm1dcnn_forward.1} parent=1 // pred_check
      _
    $region15: #{lstm1dcnn_forward.1} parent=1 // pred_check_branch
      %17 = sbr.rel (0) target = $region17
    $region16: #{lstm1dcnn_forward.1} parent=1 // pred_region
      _
    $region17: #{lstm1dcnn_forward.1} parent=1 // pred_fallthru
      _
    %v18 = vld [vmem:[%s3 + $0xc0] sm:$0xff]
    %v19 = vld [vmem:[%s3 + $0xc8] sm:$0xff]
    %v20 = vld [vmem:[%s3 + $0xd0] sm:$0xff]
    %v21 = vld [vmem:[%s3 + $0xd8] sm:$0xff]
    %v22 = vld [vmem:[%s3 + $0xe0] sm:$0xff]
    %v23 = vld [vmem:[%s3 + $0xe8] sm:$0xff]
    %v24 = vld [vmem:[%s3 + $0xf0] sm:$0xff]
    %v25 = vld [vmem:[%s3 + $0xf8] sm:$0xff]
    %v26 = vld [vmem:[%s3 + $0x100] sm:$0xff]
    %v27 = vld [vmem:[%s3 + $0x108] sm:$0xff]
    %v28 = vld [vmem:[%s3 + $0x110] sm:$0xff]
    %v29 = vld [vmem:[%s3 + $0x118] sm:$0xff]
    %v30 = vld [vmem:[%s3 + $0x120] sm:$0x1]
    %v31 = vld [vmem:[%s3 + $0x128] sm:$0xff]
    %v32 = vld [vmem:[%s3 + $0x130] sm:$0xff]
    %v33 = vld [vmem:[%s3 + $0x138] sm:$0xff]
    %v34 = vld [vmem:[%s3 + $0x140] sm:$0xff]
    %v35 = vld [vmem:[%s3 + $0x148] sm:$0xff]
    %v36 = vld [vmem:[%s3 + $0x150] sm:$0xff]
    %v37 = vld [vmem:[%s3 + $0x158] sm:$0xff]
    %v38 = vld [vmem:[%s3 + $0x160] sm:$0xff]
    %v39 = vld [vmem:[%s3 + $0x168] sm:$0x1]
    %v40 = vld [vmem:[%s0] sm:$0xff]
    %v41 = vld [vmem:[%s0 + $0x8] sm:$0xff]
    %v42 = vld [vmem:[%s0 + $0x10] sm:$0xff]
    %v43 = vld [vmem:[%s0 + $0x18] sm:$0xff]
    %v44 = vld [vmem:[%s0 + $0x20] sm:$0xff]
    %v45 = vld [vmem:[%s0 + $0x28] sm:$0xff]
    %v46 = vld [vmem:[%s0 + $0x30] sm:$0xff]
    %v47 = vld [vmem:[%s0 + $0x38] sm:$0xff]
    %v48 = vld [vmem:[%s0 + $0x40] sm:$0xff]
    %v49 = vld [vmem:[%s0 + $0x48] sm:$0xff]
    %v50 = vld [vmem:[%s0 + $0x50] sm:$0xff]
    %v51 = vld [vmem:[%s0 + $0x58] sm:$0xff]
    %v52 = vld [vmem:[%s0 + $0x60] sm:$0xff]
    %v53 = vld [vmem:[%s0 + $0x68] sm:$0xff]
    %v54 = vld [vmem:[%s0 + $0x70] sm:$0xff]
    %v55 = vld [vmem:[%s0 + $0x78] sm:$0xff]
    %v56 = vld [vmem:[%s0 + $0x80] sm:$0x3f]
    %v57 = vld [vmem:[%s3] sm:$0x1]
    %59 = vset.pattern.permute.xlu0 0
    %60 = vperm.xlu0 %59, %v40
    %v61 = vpop.permute.xlu0 %60
    %64 = vset.pattern.permute.xlu0 0
    %65 = vperm.xlu0 %64, %v41
    %v66 = vpop.permute.xlu0 %65
    %69 = vset.pattern.permute.xlu0 0
    %70 = vperm.xlu0 %69, %v42
    %v71 = vpop.permute.xlu0 %70
    %74 = vset.pattern.permute.xlu0 0
    %75 = vperm.xlu0 %74, %v43
    %v76 = vpop.permute.xlu0 %75
    %79 = vset.pattern.permute.xlu0 0
    %80 = vperm.xlu0 %79, %v44
    %v81 = vpop.permute.xlu0 %80
    %84 = vset.pattern.permute.xlu0 0
    %85 = vperm.xlu0 %84, %v45
    %v86 = vpop.permute.xlu0 %85
    %89 = vset.pattern.permute.xlu0 0
    %90 = vperm.xlu0 %89, %v46
    %v91 = vpop.permute.xlu0 %90
    %94 = vset.pattern.permute.xlu0 0
    %95 = vperm.xlu0 %94, %v47
    %v96 = vpop.permute.xlu0 %95
    %99 = vset.pattern.permute.xlu0 0
    %100 = vperm.xlu0 %99, %v48
    %v101 = vpop.permute.xlu0 %100
    %104 = vset.pattern.permute.xlu0 0
    %105 = vperm.xlu0 %104, %v49
    %v106 = vpop.permute.xlu0 %105
    %109 = vset.pattern.permute.xlu0 0
    %110 = vperm.xlu0 %109, %v50
    %v111 = vpop.permute.xlu0 %110
    %114 = vset.pattern.permute.xlu0 0
    %115 = vperm.xlu0 %114, %v51
    %v116 = vpop.permute.xlu0 %115
    %119 = vset.pattern.permute.xlu0 0
    %120 = vperm.xlu0 %119, %v52
    %v121 = vpop.permute.xlu0 %120
    %124 = vset.pattern.permute.xlu0 0
    %125 = vperm.xlu0 %124, %v53
    %v126 = vpop.permute.xlu0 %125
    %129 = vset.pattern.permute.xlu0 0
    %130 = vperm.xlu0 %129, %v54
    %v131 = vpop.permute.xlu0 %130
    %134 = vset.pattern.permute.xlu0 0
    %135 = vperm.xlu0 %134, %v55
    %v136 = vpop.permute.xlu0 %135
    %139 = vset.pattern.permute.xlu0 0
    %140 = vperm.xlu0 %139, %v56
    %v141 = vpop.permute.xlu0 %140
    %v143 = vperm.slane %v57, 0
    %v144 = vmul.f32 %v61, %v143
    %v145 = vmul.f32 %v66, %v143
    %v146 = vmul.f32 %v71, %v143
    %v147 = vmul.f32 %v76, %v143
    %v148 = vmul.f32 %v81, %v143
    %v149 = vmul.f32 %v86, %v143
    %v150 = vmul.f32 %v91, %v143
    %v151 = vmul.f32 %v96, %v143
    %v152 = vmul.f32 %v101, %v143
    %v153 = vmul.f32 %v106, %v143
    %v154 = vmul.f32 %v111, %v143
    %v155 = vmul.f32 %v116, %v143
    %v156 = vmul.f32 %v121, %v143
    %v157 = vmul.f32 %v126, %v143
    %v158 = vmul.f32 %v131, %v143
    %v159 = vmul.f32 %v136, %v143
    %v160 = vmul.f32 %v141, %v143
    %v161 = vadd.f32 %v144, 0.0
    %v162 = vadd.f32 %v145, 0.0
    %v163 = vadd.f32 %v146, 0.0
    %v164 = vadd.f32 %v147, 0.0
    %v165 = vadd.f32 %v148, 0.0
    %v166 = vadd.f32 %v149, 0.0
    %v167 = vadd.f32 %v150, 0.0
    %v168 = vadd.f32 %v151, 0.0
    %v169 = vadd.f32 %v152, 0.0
    %v170 = vadd.f32 %v153, 0.0
    %v171 = vadd.f32 %v154, 0.0
    %v172 = vadd.f32 %v155, 0.0
    %v173 = vadd.f32 %v156, 0.0
    %v174 = vadd.f32 %v157, 0.0
    %v175 = vadd.f32 %v158, 0.0
    %v176 = vadd.f32 %v159, 0.0
    %v177 = vadd.f32 %v160, 0.0
    %v178 = vld [vmem:[%s3 + $0x8] sm:$0x1]
    %v179 = vperm.slane %v178, 0
    %v180 = vmul.f32 %v61, %v179
    %v181 = vmul.f32 %v66, %v179
    %v182 = vmul.f32 %v71, %v179
    %v183 = vmul.f32 %v76, %v179
    %v184 = vmul.f32 %v81, %v179
    %v185 = vmul.f32 %v86, %v179
    %v186 = vmul.f32 %v91, %v179
    %v187 = vmul.f32 %v96, %v179
    %v188 = vmul.f32 %v101, %v179
    %v189 = vmul.f32 %v106, %v179
    %v190 = vmul.f32 %v111, %v179
    %v191 = vmul.f32 %v116, %v179
    %v192 = vmul.f32 %v121, %v179
    %v193 = vmul.f32 %v126, %v179
    %v194 = vmul.f32 %v131, %v179
    %v195 = vmul.f32 %v136, %v179
    %v196 = vmul.f32 %v141, %v179
    %vm214 = vcmask 1046528
    %v215 = vrot.slane %v180, 1
    %v216 = vrot.slane %v181, 1
    %v217 = vsel %vm214, %v215, %v216
    %v218 = vrot.slane %v182, 1
    %v219 = vsel %vm214, %v216, %v218
    %v220 = vrot.slane %v183, 1
    %v221 = vsel %vm214, %v218, %v220
    %v222 = vrot.slane %v184, 1
    %v223 = vsel %vm214, %v220, %v222
    %v224 = vrot.slane %v185, 1
    %v225 = vsel %vm214, %v222, %v224
    %v226 = vrot.slane %v186, 1
    %v227 = vsel %vm214, %v224, %v226
    %v228 = vrot.slane %v187, 1
    %v229 = vsel %vm214, %v226, %v228
    %v230 = vrot.slane %v188, 1
    %v231 = vsel %vm214, %v228, %v230
    %v232 = vrot.slane %v189, 1
    %v233 = vsel %vm214, %v230, %v232
    %v234 = vrot.slane %v190, 1
    %v235 = vsel %vm214, %v232, %v234
    %v236 = vrot.slane %v191, 1
    %v237 = vsel %vm214, %v234, %v236
    %v238 = vrot.slane %v192, 1
    %v239 = vsel %vm214, %v236, %v238
    %v240 = vrot.slane %v193, 1
    %v241 = vsel %vm214, %v238, %v240
    %v242 = vrot.slane %v194, 1
    %v243 = vsel %vm214, %v240, %v242
    %v244 = vrot.slane %v195, 1
    %v245 = vsel %vm214, %v242, %v244
    %v246 = vrot.slane %v196, 1
    %v247 = vsel %vm214, %v244, %v246
    %v265 = vadd.f32 %v161, %v217
    %v266 = vadd.f32 %v162, %v219
    %v267 = vadd.f32 %v163, %v221
    %v268 = vadd.f32 %v164, %v223
    %v269 = vadd.f32 %v165, %v225
    %v270 = vadd.f32 %v166, %v227
    %v271 = vadd.f32 %v167, %v229
    %v272 = vadd.f32 %v168, %v231
    %v273 = vadd.f32 %v169, %v233
    %v274 = vadd.f32 %v170, %v235
    %v275 = vadd.f32 %v171, %v237
    %v276 = vadd.f32 %v172, %v239
    %v277 = vadd.f32 %v173, %v241
    %v278 = vadd.f32 %v174, %v243
    %v279 = vadd.f32 %v175, %v245
    %v280 = vadd.f32 %v176, %v247
    %v281 = vadd.f32 %v177, %v246
    %v282 = vld [vmem:[%s3 + $0x10] sm:$0x1]
    %v283 = vperm.slane %v282, 0
    %v284 = vmul.f32 %v61, %v283
    %v285 = vmul.f32 %v66, %v283
    %v286 = vmul.f32 %v71, %v283
    %v287 = vmul.f32 %v76, %v283
    %v288 = vmul.f32 %v81, %v283
    %v289 = vmul.f32 %v86, %v283
    %v290 = vmul.f32 %v91, %v283
    %v291 = vmul.f32 %v96, %v283
    %v292 = vmul.f32 %v101, %v283
    %v293 = vmul.f32 %v106, %v283
    %v294 = vmul.f32 %v111, %v283
    %v295 = vmul.f32 %v116, %v283
    %v296 = vmul.f32 %v121, %v283
    %v297 = vmul.f32 %v126, %v283
    %v298 = vmul.f32 %v131, %v283
    %v299 = vmul.f32 %v136, %v283
    %v300 = vmul.f32 %v141, %v283
    %vm318 = vcmask 1045504
    %v319 = vrot.slane %v284, 2
    %v320 = vrot.slane %v285, 2
    %v321 = vsel %vm318, %v319, %v320
    %v322 = vrot.slane %v286, 2
    %v323 = vsel %vm318, %v320, %v322
    %v324 = vrot.slane %v287, 2
    %v325 = vsel %vm318, %v322, %v324
    %v326 = vrot.slane %v288, 2
    %v327 = vsel %vm318, %v324, %v326
    %v328 = vrot.slane %v289, 2
    %v329 = vsel %vm318, %v326, %v328
    %v330 = vrot.slane %v290, 2
    %v331 = vsel %vm318, %v328, %v330
    %v332 = vrot.slane %v291, 2
    %v333 = vsel %vm318, %v330, %v332
    %v334 = vrot.slane %v292, 2
    %v335 = vsel %vm318, %v332, %v334
    %v336 = vrot.slane %v293, 2
    %v337 = vsel %vm318, %v334, %v336
    %v338 = vrot.slane %v294, 2
    %v339 = vsel %vm318, %v336, %v338
    %v340 = vrot.slane %v295, 2
    %v341 = vsel %vm318, %v338, %v340
    %v342 = vrot.slane %v296, 2
    %v343 = vsel %vm318, %v340, %v342
    %v344 = vrot.slane %v297, 2
    %v345 = vsel %vm318, %v342, %v344
    %v346 = vrot.slane %v298, 2
    %v347 = vsel %vm318, %v344, %v346
    %v348 = vrot.slane %v299, 2
    %v349 = vsel %vm318, %v346, %v348
    %v350 = vrot.slane %v300, 2
    %v351 = vsel %vm318, %v348, %v350
    %v369 = vadd.f32 %v265, %v321
    %v370 = vadd.f32 %v266, %v323
    %v371 = vadd.f32 %v267, %v325
    %v372 = vadd.f32 %v268, %v327
    %v373 = vadd.f32 %v269, %v329
    %v374 = vadd.f32 %v270, %v331
    %v375 = vadd.f32 %v271, %v333
    %v376 = vadd.f32 %v272, %v335
    %v377 = vadd.f32 %v273, %v337
    %v378 = vadd.f32 %v274, %v339
    %v379 = vadd.f32 %v275, %v341
    %v380 = vadd.f32 %v276, %v343
    %v381 = vadd.f32 %v277, %v345
    %v382 = vadd.f32 %v278, %v347
    %v383 = vadd.f32 %v279, %v349
    %v384 = vadd.f32 %v280, %v351
    %v385 = vadd.f32 %v281, %v350
    %v386 = vld [vmem:[%s3 + $0x18] sm:$0x1]
    %v387 = vperm.slane %v386, 0
    %v388 = vadd.f32 %v369, %v387
    %v389 = vadd.f32 %v370, %v387
    %v390 = vadd.f32 %v371, %v387
    %v391 = vadd.f32 %v372, %v387
    %v392 = vadd.f32 %v373, %v387
    %v393 = vadd.f32 %v374, %v387
    %v394 = vadd.f32 %v375, %v387
    %v395 = vadd.f32 %v376, %v387
    %v396 = vadd.f32 %v377, %v387
    %v397 = vadd.f32 %v378, %v387
    %v398 = vadd.f32 %v379, %v387
    %v399 = vadd.f32 %v380, %v387
    %v400 = vadd.f32 %v381, %v387
    %v401 = vadd.f32 %v382, %v387
    %v402 = vadd.f32 %v383, %v387
    %v403 = vadd.f32 %v384, %v387
    %v404 = vadd.f32 %v385, %v387
    %v405 = vmax.f32 %v388, 0.0
    %v406 = vmax.f32 %v389, 0.0
    %v407 = vmax.f32 %v390, 0.0
    %v408 = vmax.f32 %v391, 0.0
    %v409 = vmax.f32 %v392, 0.0
    %v410 = vmax.f32 %v393, 0.0
    %v411 = vmax.f32 %v394, 0.0
    %v412 = vmax.f32 %v395, 0.0
    %v413 = vmax.f32 %v396, 0.0
    %v414 = vmax.f32 %v397, 0.0
    %v415 = vmax.f32 %v398, 0.0
    %v416 = vmax.f32 %v399, 0.0
    %v417 = vmax.f32 %v400, 0.0
    %v418 = vmax.f32 %v401, 0.0
    %v419 = vmax.f32 %v402, 0.0
    %v420 = vmax.f32 %v403, 0.0
    %v421 = vmax.f32 %v404, 0.0
    %v439 = vrot.slane %v405, 1
    %v440 = vrot.slane %v406, 1
    %v441 = vsel %vm214, %v439, %v440
    %v442 = vrot.slane %v407, 1
    %v443 = vsel %vm214, %v440, %v442
    %v444 = vrot.slane %v408, 1
    %v445 = vsel %vm214, %v442, %v444
    %v446 = vrot.slane %v409, 1
    %v447 = vsel %vm214, %v444, %v446
    %v448 = vrot.slane %v410, 1
    %v449 = vsel %vm214, %v446, %v448
    %v450 = vrot.slane %v411, 1
    %v451 = vsel %vm214, %v448, %v450
    %v452 = vrot.slane %v412, 1
    %v453 = vsel %vm214, %v450, %v452
    %v454 = vrot.slane %v413, 1
    %v455 = vsel %vm214, %v452, %v454
    %v456 = vrot.slane %v414, 1
    %v457 = vsel %vm214, %v454, %v456
    %v458 = vrot.slane %v415, 1
    %v459 = vsel %vm214, %v456, %v458
    %v460 = vrot.slane %v416, 1
    %v461 = vsel %vm214, %v458, %v460
    %v462 = vrot.slane %v417, 1
    %v463 = vsel %vm214, %v460, %v462
    %v464 = vrot.slane %v418, 1
    %v465 = vsel %vm214, %v462, %v464
    %v466 = vrot.slane %v419, 1
    %v467 = vsel %vm214, %v464, %v466
    %v468 = vrot.slane %v420, 1
    %v469 = vsel %vm214, %v466, %v468
    %v470 = vrot.slane %v421, 1
    %v471 = vsel %vm214, %v468, %v470
    %v489 = vmax.f32 %v405, %v441
    %v490 = vmax.f32 %v406, %v443
    %v491 = vmax.f32 %v407, %v445
    %v492 = vmax.f32 %v408, %v447
    %v493 = vmax.f32 %v409, %v449
    %v494 = vmax.f32 %v410, %v451
    %v495 = vmax.f32 %v411, %v453
    %v496 = vmax.f32 %v412, %v455
    %v497 = vmax.f32 %v413, %v457
    %v498 = vmax.f32 %v414, %v459
    %v499 = vmax.f32 %v415, %v461
    %v500 = vmax.f32 %v416, %v463
    %v501 = vmax.f32 %v417, %v465
    %v502 = vmax.f32 %v418, %v467
    %v503 = vmax.f32 %v419, %v469
    %v504 = vmax.f32 %v420, %v471
    %v505 = vmax.f32 %v421, %v470
    %v506 = vrot.slane %v405, 2
    %v507 = vrot.slane %v406, 2
    %v508 = vsel %vm318, %v506, %v507
    %v509 = vrot.slane %v407, 2
    %v510 = vsel %vm318, %v507, %v509
    %v511 = vrot.slane %v408, 2
    %v512 = vsel %vm318, %v509, %v511
    %v513 = vrot.slane %v409, 2
    %v514 = vsel %vm318, %v511, %v513
    %v515 = vrot.slane %v410, 2
    %v516 = vsel %vm318, %v513, %v515
    %v517 = vrot.slane %v411, 2
    %v518 = vsel %vm318, %v515, %v517
    %v519 = vrot.slane %v412, 2
    %v520 = vsel %vm318, %v517, %v519
    %v521 = vrot.slane %v413, 2
    %v522 = vsel %vm318, %v519, %v521
    %v523 = vrot.slane %v414, 2
    %v524 = vsel %vm318, %v521, %v523
    %v525 = vrot.slane %v415, 2
    %v526 = vsel %vm318, %v523, %v525
    %v527 = vrot.slane %v416, 2
    %v528 = vsel %vm318, %v525, %v527
    %v529 = vrot.slane %v417, 2
    %v530 = vsel %vm318, %v527, %v529
    %v531 = vrot.slane %v418, 2
    %v532 = vsel %vm318, %v529, %v531
    %v533 = vrot.slane %v419, 2
    %v534 = vsel %vm318, %v531, %v533
    %v535 = vrot.slane %v420, 2
    %v536 = vsel %vm318, %v533, %v535
    %v537 = vrot.slane %v421, 2
    %v538 = vsel %vm318, %v535, %v537
    %v556 = vmax.f32 %v489, %v508
    %v557 = vmax.f32 %v490, %v510
    %v558 = vmax.f32 %v491, %v512
    %v559 = vmax.f32 %v492, %v514
    %v560 = vmax.f32 %v493, %v516
    %v561 = vmax.f32 %v494, %v518
    %v562 = vmax.f32 %v495, %v520
    %v563 = vmax.f32 %v496, %v522
    %v564 = vmax.f32 %v497, %v524
    %v565 = vmax.f32 %v498, %v526
    %v566 = vmax.f32 %v499, %v528
    %v567 = vmax.f32 %v500, %v530
    %v568 = vmax.f32 %v501, %v532
    %v569 = vmax.f32 %v502, %v534
    %v570 = vmax.f32 %v503, %v536
    %v571 = vmax.f32 %v504, %v538
    %v572 = vmax.f32 %v505, %v537
    %vm573 = vcmask 130048
    %574 = vst.msk [vmem:[#allocation2] sm:$0xff] %vm573, %v556
    %575 = vst.msk [vmem:[#allocation2 + $0x8] sm:$0xff] %vm573, %v557
    %576 = vst.msk [vmem:[#allocation2 + $0x10] sm:$0xff] %vm573, %v558
    %577 = vst.msk [vmem:[#allocation2 + $0x18] sm:$0xff] %vm573, %v559
    %578 = vst.msk [vmem:[#allocation2 + $0x20] sm:$0xff] %vm573, %v560
    %579 = vst.msk [vmem:[#allocation2 + $0x28] sm:$0xff] %vm573, %v561
    %580 = vst.msk [vmem:[#allocation2 + $0x30] sm:$0xff] %vm573, %v562
    %581 = vst.msk [vmem:[#allocation2 + $0x38] sm:$0xff] %vm573, %v563
    %582 = vst.msk [vmem:[#allocation2 + $0x40] sm:$0xff] %vm573, %v564
    %583 = vst.msk [vmem:[#allocation2 + $0x48] sm:$0xff] %vm573, %v565
    %584 = vst.msk [vmem:[#allocation2 + $0x50] sm:$0xff] %vm573, %v566
    %585 = vst.msk [vmem:[#allocation2 + $0x58] sm:$0xff] %vm573, %v567
    %586 = vst.msk [vmem:[#allocation2 + $0x60] sm:$0xff] %vm573, %v568
    %587 = vst.msk [vmem:[#allocation2 + $0x68] sm:$0xff] %vm573, %v569
    %588 = vst.msk [vmem:[#allocation2 + $0x70] sm:$0xff] %vm573, %v570
    %589 = vst.msk [vmem:[#allocation2 + $0x78] sm:$0xff] %vm573, %v571
    %vm590 = vcmask 123904
    %591 = vst.msk [vmem:[#allocation2 + $0x80] sm:$0x3] %vm590, %v572
    %v592 = vld [vmem:[#allocation2] ss:$3 sm:$0xff]
    %s593 = scalar_lea.vmem [#allocation2], 24
    %v594 = vld [vmem:[%s593] ss:$3 sm:$0xff]
    %s595 = scalar_lea.vmem [#allocation2], 48
    %v596 = vld [vmem:[%s595] ss:$3 sm:$0xff]
    %s597 = scalar_lea.vmem [#allocation2], 72
    %v598 = vld [vmem:[%s597] ss:$3 sm:$0xff]
    %s599 = scalar_lea.vmem [#allocation2], 96
    %v600 = vld [vmem:[%s599] ss:$3 sm:$0xff]
    %s601 = scalar_lea.vmem [#allocation2], 120
    %v602 = vld [vmem:[%s601] ss:$3 sm:$0xf]
    %v603 = vld [vmem:[%s3 + $0x20] sm:$0xff]
    %v604 = vld [vmem:[%s3 + $0x28] sm:$0xff]
    %v605 = vld [vmem:[%s3 + $0x30] sm:$0xff]
    %v606 = vld [vmem:[%s3 + $0x38] sm:$0xff]
    %v613 = vrot.slane %v592, 1
    %v614 = vrot.slane %v594, 1
    %v615 = vsel %vm214, %v613, %v614
    %v616 = vrot.slane %v596, 1
    %v617 = vsel %vm214, %v614, %v616
    %v618 = vrot.slane %v598, 1
    %v619 = vsel %vm214, %v616, %v618
    %v620 = vrot.slane %v600, 1
    %v621 = vsel %vm214, %v618, %v620
    %v622 = vrot.slane %v602, 1
    %v623 = vsel %vm214, %v620, %v622
    %v624 = vsel %vm573, %v615, 0
    %v626 = vsel %vm573, %v617, 0
    %v628 = vsel %vm573, %v619, 0
    %v630 = vsel %vm573, %v621, 0
    %v632 = vsel %vm573, %v623, 0
    %v634 = vsel %vm573, %v622, 0
    %636 = vmatpush.msra.mxu0 0.0
    %637 = vmatpush.msra.mxu0 0.0
    %638 = vmatpush.msra.mxu0 0.0
    %639 = vmatpush.msra.mxu0 0.0
    %640 = vmatpush.msra.mxu0 0.0
    %641 = vmatpush.msra.mxu0 0.0
    %642 = vmatpush.msra.mxu0 0.0
    %643 = vmatpush.msra.mxu0 0.0
    %644 = vmatpush.msra.mxu0 0.0
    %645 = vmatpush.msra.mxu0 0.0
    %646 = vmatpush.msra.mxu0 0.0
    %647 = vmatpush.msra.mxu0 0.0
    %648 = vmatpush.msra.mxu0 0.0
    %649 = vmatpush.msra.mxu0 0.0
    %650 = vmatpush.msra.mxu0 %v606
    %651 = vmatpush.msra.mxu0 %v605
    %652 = vmatmul.f32.gmra.mxu0 %v624
    %v653 = vpop.f32.mrf.mxu0
    %v654 = vadd.f32 0.0, %v653
    %655 = vmatmul.f32.gmra.mxu0 %v626
    %v656 = vpop.f32.mrf.mxu0
    %v657 = vadd.f32 0.0, %v656
    %658 = vmatmul.f32.gmra.mxu0 %v628
    %v659 = vpop.f32.mrf.mxu0
    %v660 = vadd.f32 0.0, %v659
    %661 = vmatmul.f32.gmra.mxu0 %v630
    %v662 = vpop.f32.mrf.mxu0
    %v663 = vadd.f32 0.0, %v662
    %664 = vmatmul.f32.gmra.mxu0 %v632
    %v665 = vpop.f32.mrf.mxu0
    %v666 = vadd.f32 0.0, %v665
    %667 = vmatmul.f32.gmra.mxu0 %v634
    %v668 = vpop.f32.mrf.mxu0
    %v669 = vadd.f32 0.0, %v668
    %670 = vdwg.mxu0
    %v671 = vsel %vm573, %v592, 0
    %v673 = vsel %vm573, %v594, 0
    %v675 = vsel %vm573, %v596, 0
    %v677 = vsel %vm573, %v598, 0
    %v679 = vsel %vm573, %v600, 0
    %v681 = vsel %vm573, %v602, 0
    %683 = vmatpush.msra.mxu0 0.0
    %684 = vmatpush.msra.mxu0 0.0
    %685 = vmatpush.msra.mxu0 0.0
    %686 = vmatpush.msra.mxu0 0.0
    %687 = vmatpush.msra.mxu0 0.0
    %688 = vmatpush.msra.mxu0 0.0
    %689 = vmatpush.msra.mxu0 0.0
    %690 = vmatpush.msra.mxu0 0.0
    %691 = vmatpush.msra.mxu0 0.0
    %692 = vmatpush.msra.mxu0 0.0
    %693 = vmatpush.msra.mxu0 0.0
    %694 = vmatpush.msra.mxu0 0.0
    %695 = vmatpush.msra.mxu0 0.0
    %696 = vmatpush.msra.mxu0 0.0
    %697 = vmatpush.msra.mxu0 %v604
    %698 = vmatpush.msra.mxu0 %v603
    %699 = vmatmul.f32.gmra.mxu0 %v671
    %v700 = vpop.f32.mrf.mxu0
    %v701 = vadd.f32 %v654, %v700
    %702 = vmatmul.f32.gmra.mxu0 %v673
    %v703 = vpop.f32.mrf.mxu0
    %v704 = vadd.f32 %v657, %v703
    %705 = vmatmul.f32.gmra.mxu0 %v675
    %v706 = vpop.f32.mrf.mxu0
    %v707 = vadd.f32 %v660, %v706
    %708 = vmatmul.f32.gmra.mxu0 %v677
    %v709 = vpop.f32.mrf.mxu0
    %v710 = vadd.f32 %v663, %v709
    %711 = vmatmul.f32.gmra.mxu0 %v679
    %v712 = vpop.f32.mrf.mxu0
    %v713 = vadd.f32 %v666, %v712
    %714 = vmatmul.f32.gmra.mxu0 %v681
    %v715 = vpop.f32.mrf.mxu0
    %v716 = vadd.f32 %v669, %v715
    %717 = vdwg.mxu0
    %v718 = vld [vmem:[%s3 + $0x40] sm:$0xff]
    %v719 = vld [vmem:[%s3 + $0x48] sm:$0xff]
    %v720 = vrot.slane %v592, 2
    %v721 = vrot.slane %v594, 2
    %v722 = vsel %vm318, %v720, %v721
    %v723 = vrot.slane %v596, 2
    %v724 = vsel %vm318, %v721, %v723
    %v725 = vrot.slane %v598, 2
    %v726 = vsel %vm318, %v723, %v725
    %v727 = vrot.slane %v600, 2
    %v728 = vsel %vm318, %v725, %v727
    %v729 = vrot.slane %v602, 2
    %v730 = vsel %vm318, %v727, %v729
    %v731 = vsel %vm573, %v722, 0
    %v733 = vsel %vm573, %v724, 0
    %v735 = vsel %vm573, %v726, 0
    %v737 = vsel %vm573, %v728, 0
    %v739 = vsel %vm573, %v730, 0
    %v741 = vsel %vm573, %v729, 0
    %743 = vmatpush.msra.mxu0 0.0
    %744 = vmatpush.msra.mxu0 0.0
    %745 = vmatpush.msra.mxu0 0.0
    %746 = vmatpush.msra.mxu0 0.0
    %747 = vmatpush.msra.mxu0 0.0
    %748 = vmatpush.msra.mxu0 0.0
    %749 = vmatpush.msra.mxu0 0.0
    %750 = vmatpush.msra.mxu0 0.0
    %751 = vmatpush.msra.mxu0 0.0
    %752 = vmatpush.msra.mxu0 0.0
    %753 = vmatpush.msra.mxu0 0.0
    %754 = vmatpush.msra.mxu0 0.0
    %755 = vmatpush.msra.mxu0 0.0
    %756 = vmatpush.msra.mxu0 0.0
    %757 = vmatpush.msra.mxu0 %v719
    %758 = vmatpush.msra.mxu0 %v718
    %759 = vmatmul.f32.gmra.mxu0 %v731
    %v760 = vpop.f32.mrf.mxu0
    %v761 = vadd.f32 0.0, %v760
    %762 = vmatmul.f32.gmra.mxu0 %v733
    %v763 = vpop.f32.mrf.mxu0
    %v764 = vadd.f32 0.0, %v763
    %765 = vmatmul.f32.gmra.mxu0 %v735
    %v766 = vpop.f32.mrf.mxu0
    %v767 = vadd.f32 0.0, %v766
    %768 = vmatmul.f32.gmra.mxu0 %v737
    %v769 = vpop.f32.mrf.mxu0
    %v770 = vadd.f32 0.0, %v769
    %771 = vmatmul.f32.gmra.mxu0 %v739
    %v772 = vpop.f32.mrf.mxu0
    %v773 = vadd.f32 0.0, %v772
    %774 = vmatmul.f32.gmra.mxu0 %v741
    %v775 = vpop.f32.mrf.mxu0
    %v776 = vadd.f32 0.0, %v775
    %777 = vdwg.mxu0
    %v778 = vadd.f32 %v701, %v761
    %v779 = vadd.f32 %v704, %v764
    %v780 = vadd.f32 %v707, %v767
    %v781 = vadd.f32 %v710, %v770
    %v782 = vadd.f32 %v713, %v773
    %v783 = vadd.f32 %v716, %v776
    %v784 = vld [vmem:[%s3 + $0x50] sm:$0x1]
    %v785 = vperm.slane %v784, 0
    %v786 = vadd.f32 %v778, %v785
    %v787 = vadd.f32 %v779, %v785
    %v788 = vadd.f32 %v780, %v785
    %v789 = vadd.f32 %v781, %v785
    %v790 = vadd.f32 %v782, %v785
    %v791 = vadd.f32 %v783, %v785
    %v792 = vmax.f32 %v786, 0.0
    %v793 = vmax.f32 %v787, 0.0
    %v794 = vmax.f32 %v788, 0.0
    %v795 = vmax.f32 %v789, 0.0
    %v796 = vmax.f32 %v790, 0.0
    %v797 = vmax.f32 %v791, 0.0
    %v804 = vrot.slane %v792, 1
    %v805 = vrot.slane %v793, 1
    %v806 = vsel %vm214, %v804, %v805
    %v807 = vrot.slane %v794, 1
    %v808 = vsel %vm214, %v805, %v807
    %v809 = vrot.slane %v795, 1
    %v810 = vsel %vm214, %v807, %v809
    %v811 = vrot.slane %v796, 1
    %v812 = vsel %vm214, %v809, %v811
    %v813 = vrot.slane %v797, 1
    %v814 = vsel %vm214, %v811, %v813
    %v820 = vmax.f32 %v792, %v806
    %v821 = vmax.f32 %v793, %v808
    %v822 = vmax.f32 %v794, %v810
    %v823 = vmax.f32 %v795, %v812
    %v824 = vmax.f32 %v796, %v814
    %v825 = vrot.slane %v792, 2
    %v826 = vrot.slane %v793, 2
    %v827 = vsel %vm318, %v825, %v826
    %v828 = vrot.slane %v794, 2
    %v829 = vsel %vm318, %v826, %v828
    %v830 = vrot.slane %v795, 2
    %v831 = vsel %vm318, %v828, %v830
    %v832 = vrot.slane %v796, 2
    %v833 = vsel %vm318, %v830, %v832
    %v834 = vrot.slane %v797, 2
    %v835 = vsel %vm318, %v832, %v834
    %v841 = vmax.f32 %v820, %v827
    %v842 = vmax.f32 %v821, %v829
    %v843 = vmax.f32 %v822, %v831
    %v844 = vmax.f32 %v823, %v833
    %v845 = vmax.f32 %v824, %v835
    %vm846 = vcmask 261120
    %847 = vst.msk [vmem:[#allocation3] sm:$0xff] %vm846, %v841
    %848 = vst.msk [vmem:[#allocation3 + $0x8] sm:$0xff] %vm846, %v842
    %849 = vst.msk [vmem:[#allocation3 + $0x10] sm:$0xff] %vm846, %v843
    %850 = vst.msk [vmem:[#allocation3 + $0x18] sm:$0xff] %vm846, %v844
    %851 = vst.msk [vmem:[#allocation3 + $0x20] sm:$0xff] %vm846, %v845
    %v852 = vld [vmem:[#allocation3] ss:$3 sm:$0xff]
    %s853 = scalar_lea.vmem [#allocation3], 24
    %v854 = vld [vmem:[%s853] ss:$3 sm:$0x3f]
    %v855 = vld [vmem:[%s3 + $0x58] sm:$0xff]
    %v856 = vld [vmem:[%s3 + $0x60] sm:$0xff]
    %v857 = vld [vmem:[%s3 + $0x68] sm:$0xff]
    %v858 = vld [vmem:[%s3 + $0x70] sm:$0xff]
    %v859 = vld [vmem:[%s3 + $0x78] sm:$0xff]
    %v860 = vld [vmem:[%s3 + $0x80] sm:$0xff]
    %v861 = vld [vmem:[%s3 + $0x88] sm:$0xff]
    %v862 = vld [vmem:[%s3 + $0x90] sm:$0xff]
    %v865 = vrot.slane %v852, 1
    %v866 = vrot.slane %v854, 1
    %v867 = vsel %vm214, %v865, %v866
    %v868 = vsel %vm846, %v867, 0
    %v870 = vsel %vm846, %v866, 0
    %872 = vmatpush.msra.mxu0 0.0
    %873 = vmatpush.msra.mxu0 0.0
    %874 = vmatpush.msra.mxu0 0.0
    %875 = vmatpush.msra.mxu0 0.0
    %876 = vmatpush.msra.mxu0 0.0
    %877 = vmatpush.msra.mxu0 0.0
    %878 = vmatpush.msra.mxu0 0.0
    %879 = vmatpush.msra.mxu0 0.0
    %880 = vmatpush.msra.mxu0 0.0
    %881 = vmatpush.msra.mxu0 0.0
    %882 = vmatpush.msra.mxu0 0.0
    %883 = vmatpush.msra.mxu0 0.0
    %884 = vmatpush.msra.mxu0 %v862
    %885 = vmatpush.msra.mxu0 %v861
    %886 = vmatpush.msra.mxu0 %v860
    %887 = vmatpush.msra.mxu0 %v859
    %888 = vmatmul.f32.gmra.mxu0 %v868
    %v889 = vpop.f32.mrf.mxu0
    %v890 = vadd.f32 0.0, %v889
    %891 = vmatmul.f32.gmra.mxu0 %v870
    %v892 = vpop.f32.mrf.mxu0
    %v893 = vadd.f32 0.0, %v892
    %894 = vdwg.mxu0
    %v895 = vsel %vm846, %v852, 0
    %v897 = vsel %vm846, %v854, 0
    %899 = vmatpush.msra.mxu0 0.0
    %900 = vmatpush.msra.mxu0 0.0
    %901 = vmatpush.msra.mxu0 0.0
    %902 = vmatpush.msra.mxu0 0.0
    %903 = vmatpush.msra.mxu0 0.0
    %904 = vmatpush.msra.mxu0 0.0
    %905 = vmatpush.msra.mxu0 0.0
    %906 = vmatpush.msra.mxu0 0.0
    %907 = vmatpush.msra.mxu0 0.0
    %908 = vmatpush.msra.mxu0 0.0
    %909 = vmatpush.msra.mxu0 0.0
    %910 = vmatpush.msra.mxu0 0.0
    %911 = vmatpush.msra.mxu0 %v858
    %912 = vmatpush.msra.mxu0 %v857
    %913 = vmatpush.msra.mxu0 %v856
    %914 = vmatpush.msra.mxu0 %v855
    %915 = vmatmul.f32.gmra.mxu0 %v895
    %v916 = vpop.f32.mrf.mxu0
    %v917 = vadd.f32 %v890, %v916
    %918 = vmatmul.f32.gmra.mxu0 %v897
    %v919 = vpop.f32.mrf.mxu0
    %v920 = vadd.f32 %v893, %v919
    %921 = vdwg.mxu0
    %v922 = vld [vmem:[%s3 + $0x98] sm:$0xff]
    %v923 = vld [vmem:[%s3 + $0xa0] sm:$0xff]
    %v924 = vld [vmem:[%s3 + $0xa8] sm:$0xff]
    %v925 = vld [vmem:[%s3 + $0xb0] sm:$0xff]
    %v926 = vrot.slane %v852, 2
    %v927 = vrot.slane %v854, 2
    %v928 = vsel %vm318, %v926, %v927
    %v929 = vsel %vm846, %v928, 0
    %v931 = vsel %vm846, %v927, 0
    %933 = vmatpush.msra.mxu0 0.0
    %934 = vmatpush.msra.mxu0 0.0
    %935 = vmatpush.msra.mxu0 0.0
    %936 = vmatpush.msra.mxu0 0.0
    %937 = vmatpush.msra.mxu0 0.0
    %938 = vmatpush.msra.mxu0 0.0
    %939 = vmatpush.msra.mxu0 0.0
    %940 = vmatpush.msra.mxu0 0.0
    %941 = vmatpush.msra.mxu0 0.0
    %942 = vmatpush.msra.mxu0 0.0
    %943 = vmatpush.msra.mxu0 0.0
    %944 = vmatpush.msra.mxu0 0.0
    %945 = vmatpush.msra.mxu0 %v925
    %946 = vmatpush.msra.mxu0 %v924
    %947 = vmatpush.msra.mxu0 %v923
    %948 = vmatpush.msra.mxu0 %v922
    %949 = vmatmul.f32.gmra.mxu0 %v929
    %v950 = vpop.f32.mrf.mxu0
    %v951 = vadd.f32 0.0, %v950
    %952 = vmatmul.f32.gmra.mxu0 %v931
    %v953 = vpop.f32.mrf.mxu0
    %v954 = vadd.f32 0.0, %v953
    %955 = vdwg.mxu0
    %v956 = vadd.f32 %v917, %v951
    %v957 = vadd.f32 %v920, %v954
    %v958 = vld [vmem:[%s3 + $0xb8] sm:$0x1]
    %v959 = vperm.slane %v958, 0
    %v960 = vadd.f32 %v956, %v959
    %v961 = vadd.f32 %v957, %v959
    %v962 = vmax.f32 %v960, 0.0
    %v963 = vmax.f32 %v961, 0.0
    %v966 = vrot.slane %v962, 1
    %v967 = vrot.slane %v963, 1
    %v968 = vsel %vm214, %v966, %v967
    %v971 = vmax.f32 %v962, %v968
    %v972 = vmax.f32 %v963, %v967
    %v973 = vrot.slane %v962, 2
    %v974 = vrot.slane %v963, 2
    %v975 = vsel %vm318, %v973, %v974
    %v978 = vmax.f32 %v971, %v975
    %v979 = vmax.f32 %v972, %v974
    %vm980 = vcmask 523264
    %981 = vst.msk [vmem:[#allocation4] sm:$0xff] %vm980, %v978
    %vm982 = vcmask 517120
    %983 = vst.msk [vmem:[#allocation4 + $0x8] sm:$0x3] %vm982, %v979
    %v984 = vld [vmem:[#allocation4] ss:$3 sm:$0xf]
    %v985 = vperm.slane %v30, 0
    %v987 = vsel %vm980, %v984, 0
    %989 = vmatpush.msra.mxu0 0.0
    %990 = vmatpush.msra.mxu0 0.0
    %991 = vmatpush.msra.mxu0 0.0
    %992 = vmatpush.msra.mxu0 0.0
    %993 = vmatpush.msra.mxu0 0.0
    %994 = vmatpush.msra.mxu0 0.0
    %995 = vmatpush.msra.mxu0 0.0
    %996 = vmatpush.msra.mxu0 0.0
    %997 = vmatpush.msra.mxu0 %v25
    %998 = vmatpush.msra.mxu0 %v24
    %999 = vmatpush.msra.mxu0 %v23
    %1000 = vmatpush.msra.mxu0 %v22
    %1001 = vmatpush.msra.mxu0 %v21
    %1002 = vmatpush.msra.mxu0 %v20
    %1003 = vmatpush.msra.mxu0 %v19
    %1004 = vmatpush.msra.mxu0 %v18
    %1005 = vmatmul.f32.gmra.mxu0 %v987
    %v1006 = vpop.f32.mrf.mxu0
    %v1007 = vadd.f32 %v985, %v1006
    %1008 = vdwg.mxu0
    %s1009 = scalar_lea.vmem %s0, 136
    %v1010 = vld [vmem:[%s1009] sm:$0xff]
    %v1011 = vld [vmem:[%s1009 + $0x8] sm:$0xff]
    %v1012 = vld [vmem:[%s1009 + $0x10] sm:$0xff]
    %v1013 = vld [vmem:[%s1009 + $0x18] sm:$0xff]
    %v1014 = vld [vmem:[%s1009 + $0x20] sm:$0xff]
    %v1015 = vld [vmem:[%s1009 + $0x28] sm:$0xff]
    %v1016 = vld [vmem:[%s1009 + $0x30] sm:$0xff]
    %v1017 = vld [vmem:[%s1009 + $0x38] sm:$0xff]
    %v1018 = vld [vmem:[%s1009 + $0x40] sm:$0xff]
    %v1019 = vld [vmem:[%s1009 + $0x48] sm:$0xff]
    %v1020 = vld [vmem:[%s1009 + $0x50] sm:$0xff]
    %v1021 = vld [vmem:[%s1009 + $0x58] sm:$0xff]
    %v1022 = vld [vmem:[%s1009 + $0x60] sm:$0xff]
    %v1023 = vld [vmem:[%s1009 + $0x68] sm:$0xff]
    %v1024 = vld [vmem:[%s1009 + $0x70] sm:$0xff]
    %v1025 = vld [vmem:[%s1009 + $0x78] sm:$0xff]
    %v1026 = vld [vmem:[%s1009 + $0x80] sm:$0x3f]
    %v1027 = vld [vmem:[%s3] sm:$0x1]
    %1029 = vset.pattern.permute.xlu0 0
    %1030 = vperm.xlu0 %1029, %v1010
    %v1031 = vpop.permute.xlu0 %1030
    %1034 = vset.pattern.permute.xlu0 0
    %1035 = vperm.xlu0 %1034, %v1011
    %v1036 = vpop.permute.xlu0 %1035
    %1039 = vset.pattern.permute.xlu0 0
    %1040 = vperm.xlu0 %1039, %v1012
    %v1041 = vpop.permute.xlu0 %1040
    %1044 = vset.pattern.permute.xlu0 0
    %1045 = vperm.xlu0 %1044, %v1013
    %v1046 = vpop.permute.xlu0 %1045
    %1049 = vset.pattern.permute.xlu0 0
    %1050 = vperm.xlu0 %1049, %v1014
    %v1051 = vpop.permute.xlu0 %1050
    %1054 = vset.pattern.permute.xlu0 0
    %1055 = vperm.xlu0 %1054, %v1015
    %v1056 = vpop.permute.xlu0 %1055
    %1059 = vset.pattern.permute.xlu0 0
    %1060 = vperm.xlu0 %1059, %v1016
    %v1061 = vpop.permute.xlu0 %1060
    %1064 = vset.pattern.permute.xlu0 0
    %1065 = vperm.xlu0 %1064, %v1017
    %v1066 = vpop.permute.xlu0 %1065
    %1069 = vset.pattern.permute.xlu0 0
    %1070 = vperm.xlu0 %1069, %v1018
    %v1071 = vpop.permute.xlu0 %1070
    %1074 = vset.pattern.permute.xlu0 0
    %1075 = vperm.xlu0 %1074, %v1019
    %v1076 = vpop.permute.xlu0 %1075
    %1079 = vset.pattern.permute.xlu0 0
    %1080 = vperm.xlu0 %1079, %v1020
    %v1081 = vpop.permute.xlu0 %1080
    %1084 = vset.pattern.permute.xlu0 0
    %1085 = vperm.xlu0 %1084, %v1021
    %v1086 = vpop.permute.xlu0 %1085
    %1089 = vset.pattern.permute.xlu0 0
    %1090 = vperm.xlu0 %1089, %v1022
    %v1091 = vpop.permute.xlu0 %1090
    %1094 = vset.pattern.permute.xlu0 0
    %1095 = vperm.xlu0 %1094, %v1023
    %v1096 = vpop.permute.xlu0 %1095
    %1099 = vset.pattern.permute.xlu0 0
    %1100 = vperm.xlu0 %1099, %v1024
    %v1101 = vpop.permute.xlu0 %1100
    %1104 = vset.pattern.permute.xlu0 0
    %1105 = vperm.xlu0 %1104, %v1025
    %v1106 = vpop.permute.xlu0 %1105
    %1109 = vset.pattern.permute.xlu0 0
    %1110 = vperm.xlu0 %1109, %v1026
    %v1111 = vpop.permute.xlu0 %1110
    %v1113 = vperm.slane %v1027, 0
    %v1114 = vmul.f32 %v1031, %v1113
    %v1115 = vmul.f32 %v1036, %v1113
    %v1116 = vmul.f32 %v1041, %v1113
    %v1117 = vmul.f32 %v1046, %v1113
    %v1118 = vmul.f32 %v1051, %v1113
    %v1119 = vmul.f32 %v1056, %v1113
    %v1120 = vmul.f32 %v1061, %v1113
    %v1121 = vmul.f32 %v1066, %v1113
    %v1122 = vmul.f32 %v1071, %v1113
    %v1123 = vmul.f32 %v1076, %v1113
    %v1124 = vmul.f32 %v1081, %v1113
    %v1125 = vmul.f32 %v1086, %v1113
    %v1126 = vmul.f32 %v1091, %v1113
    %v1127 = vmul.f32 %v1096, %v1113
    %v1128 = vmul.f32 %v1101, %v1113
    %v1129 = vmul.f32 %v1106, %v1113
    %v1130 = vmul.f32 %v1111, %v1113
    %v1131 = vadd.f32 %v1114, 0.0
    %v1132 = vadd.f32 %v1115, 0.0
    %v1133 = vadd.f32 %v1116, 0.0
    %v1134 = vadd.f32 %v1117, 0.0
    %v1135 = vadd.f32 %v1118, 0.0
    %v1136 = vadd.f32 %v1119, 0.0
    %v1137 = vadd.f32 %v1120, 0.0
    %v1138 = vadd.f32 %v1121, 0.0
    %v1139 = vadd.f32 %v1122, 0.0
    %v1140 = vadd.f32 %v1123, 0.0
    %v1141 = vadd.f32 %v1124, 0.0
    %v1142 = vadd.f32 %v1125, 0.0
    %v1143 = vadd.f32 %v1126, 0.0
    %v1144 = vadd.f32 %v1127, 0.0
    %v1145 = vadd.f32 %v1128, 0.0
    %v1146 = vadd.f32 %v1129, 0.0
    %v1147 = vadd.f32 %v1130, 0.0
    %v1148 = vld [vmem:[%s3 + $0x8] sm:$0x1]
    %v1149 = vperm.slane %v1148, 0
    %v1150 = vmul.f32 %v1031, %v1149
    %v1151 = vmul.f32 %v1036, %v1149
    %v1152 = vmul.f32 %v1041, %v1149
    %v1153 = vmul.f32 %v1046, %v1149
    %v1154 = vmul.f32 %v1051, %v1149
    %v1155 = vmul.f32 %v1056, %v1149
    %v1156 = vmul.f32 %v1061, %v1149
    %v1157 = vmul.f32 %v1066, %v1149
    %v1158 = vmul.f32 %v1071, %v1149
    %v1159 = vmul.f32 %v1076, %v1149
    %v1160 = vmul.f32 %v1081, %v1149
    %v1161 = vmul.f32 %v1086, %v1149
    %v1162 = vmul.f32 %v1091, %v1149
    %v1163 = vmul.f32 %v1096, %v1149
    %v1164 = vmul.f32 %v1101, %v1149
    %v1165 = vmul.f32 %v1106, %v1149
    %v1166 = vmul.f32 %v1111, %v1149
    %v1184 = vrot.slane %v1150, 1
    %v1185 = vrot.slane %v1151, 1
    %v1186 = vsel %vm214, %v1184, %v1185
    %v1187 = vrot.slane %v1152, 1
    %v1188 = vsel %vm214, %v1185, %v1187
    %v1189 = vrot.slane %v1153, 1
    %v1190 = vsel %vm214, %v1187, %v1189
    %v1191 = vrot.slane %v1154, 1
    %v1192 = vsel %vm214, %v1189, %v1191
    %v1193 = vrot.slane %v1155, 1
    %v1194 = vsel %vm214, %v1191, %v1193
    %v1195 = vrot.slane %v1156, 1
    %v1196 = vsel %vm214, %v1193, %v1195
    %v1197 = vrot.slane %v1157, 1
    %v1198 = vsel %vm214, %v1195, %v1197
    %v1199 = vrot.slane %v1158, 1
    %v1200 = vsel %vm214, %v1197, %v1199
    %v1201 = vrot.slane %v1159, 1
    %v1202 = vsel %vm214, %v1199, %v1201
    %v1203 = vrot.slane %v1160, 1
    %v1204 = vsel %vm214, %v1201, %v1203
    %v1205 = vrot.slane %v1161, 1
    %v1206 = vsel %vm214, %v1203, %v1205
    %v1207 = vrot.slane %v1162, 1
    %v1208 = vsel %vm214, %v1205, %v1207
    %v1209 = vrot.slane %v1163, 1
    %v1210 = vsel %vm214, %v1207, %v1209
    %v1211 = vrot.slane %v1164, 1
    %v1212 = vsel %vm214, %v1209, %v1211
    %v1213 = vrot.slane %v1165, 1
    %v1214 = vsel %vm214, %v1211, %v1213
    %v1215 = vrot.slane %v1166, 1
    %v1216 = vsel %vm214, %v1213, %v1215
    %v1234 = vadd.f32 %v1131, %v1186
    %v1235 = vadd.f32 %v1132, %v1188
    %v1236 = vadd.f32 %v1133, %v1190
    %v1237 = vadd.f32 %v1134, %v1192
    %v1238 = vadd.f32 %v1135, %v1194
    %v1239 = vadd.f32 %v1136, %v1196
    %v1240 = vadd.f32 %v1137, %v1198
    %v1241 = vadd.f32 %v1138, %v1200
    %v1242 = vadd.f32 %v1139, %v1202
    %v1243 = vadd.f32 %v1140, %v1204
    %v1244 = vadd.f32 %v1141, %v1206
    %v1245 = vadd.f32 %v1142, %v1208
    %v1246 = vadd.f32 %v1143, %v1210
    %v1247 = vadd.f32 %v1144, %v1212
    %v1248 = vadd.f32 %v1145, %v1214
    %v1249 = vadd.f32 %v1146, %v1216
    %v1250 = vadd.f32 %v1147, %v1215
    %v1251 = vld [vmem:[%s3 + $0x10] sm:$0x1]
    %v1252 = vperm.slane %v1251, 0
    %v1253 = vmul.f32 %v1031, %v1252
    %v1254 = vmul.f32 %v1036, %v1252
    %v1255 = vmul.f32 %v1041, %v1252
    %v1256 = vmul.f32 %v1046, %v1252
    %v1257 = vmul.f32 %v1051, %v1252
    %v1258 = vmul.f32 %v1056, %v1252
    %v1259 = vmul.f32 %v1061, %v1252
    %v1260 = vmul.f32 %v1066, %v1252
    %v1261 = vmul.f32 %v1071, %v1252
    %v1262 = vmul.f32 %v1076, %v1252
    %v1263 = vmul.f32 %v1081, %v1252
    %v1264 = vmul.f32 %v1086, %v1252
    %v1265 = vmul.f32 %v1091, %v1252
    %v1266 = vmul.f32 %v1096, %v1252
    %v1267 = vmul.f32 %v1101, %v1252
    %v1268 = vmul.f32 %v1106, %v1252
    %v1269 = vmul.f32 %v1111, %v1252
    %v1287 = vrot.slane %v1253, 2
    %v1288 = vrot.slane %v1254, 2
    %v1289 = vsel %vm318, %v1287, %v1288
    %v1290 = vrot.slane %v1255, 2
    %v1291 = vsel %vm318, %v1288, %v1290
    %v1292 = vrot.slane %v1256, 2
    %v1293 = vsel %vm318, %v1290, %v1292
    %v1294 = vrot.slane %v1257, 2
    %v1295 = vsel %vm318, %v1292, %v1294
    %v1296 = vrot.slane %v1258, 2
    %v1297 = vsel %vm318, %v1294, %v1296
    %v1298 = vrot.slane %v1259, 2
    %v1299 = vsel %vm318, %v1296, %v1298
    %v1300 = vrot.slane %v1260, 2
    %v1301 = vsel %vm318, %v1298, %v1300
    %v1302 = vrot.slane %v1261, 2
    %v1303 = vsel %vm318, %v1300, %v1302
    %v1304 = vrot.slane %v1262, 2
    %v1305 = vsel %vm318, %v1302, %v1304
    %v1306 = vrot.slane %v1263, 2
    %v1307 = vsel %vm318, %v1304, %v1306
    %v1308 = vrot.slane %v1264, 2
    %v1309 = vsel %vm318, %v1306, %v1308
    %v1310 = vrot.slane %v1265, 2
    %v1311 = vsel %vm318, %v1308, %v1310
    %v1312 = vrot.slane %v1266, 2
    %v1313 = vsel %vm318, %v1310, %v1312
    %v1314 = vrot.slane %v1267, 2
    %v1315 = vsel %vm318, %v1312, %v1314
    %v1316 = vrot.slane %v1268, 2
    %v1317 = vsel %vm318, %v1314, %v1316
    %v1318 = vrot.slane %v1269, 2
    %v1319 = vsel %vm318, %v1316, %v1318
    %v1337 = vadd.f32 %v1234, %v1289
    %v1338 = vadd.f32 %v1235, %v1291
    %v1339 = vadd.f32 %v1236, %v1293
    %v1340 = vadd.f32 %v1237, %v1295
    %v1341 = vadd.f32 %v1238, %v1297
    %v1342 = vadd.f32 %v1239, %v1299
    %v1343 = vadd.f32 %v1240, %v1301
    %v1344 = vadd.f32 %v1241, %v1303
    %v1345 = vadd.f32 %v1242, %v1305
    %v1346 = vadd.f32 %v1243, %v1307
    %v1347 = vadd.f32 %v1244, %v1309
    %v1348 = vadd.f32 %v1245, %v1311
    %v1349 = vadd.f32 %v1246, %v1313
    %v1350 = vadd.f32 %v1247, %v1315
    %v1351 = vadd.f32 %v1248, %v1317
    %v1352 = vadd.f32 %v1249, %v1319
    %v1353 = vadd.f32 %v1250, %v1318
    %v1354 = vld [vmem:[%s3 + $0x18] sm:$0x1]
    %v1355 = vperm.slane %v1354, 0
    %v1356 = vadd.f32 %v1337, %v1355
    %v1357 = vadd.f32 %v1338, %v1355
    %v1358 = vadd.f32 %v1339, %v1355
    %v1359 = vadd.f32 %v1340, %v1355
    %v1360 = vadd.f32 %v1341, %v1355
    %v1361 = vadd.f32 %v1342, %v1355
    %v1362 = vadd.f32 %v1343, %v1355
    %v1363 = vadd.f32 %v1344, %v1355
    %v1364 = vadd.f32 %v1345, %v1355
    %v1365 = vadd.f32 %v1346, %v1355
    %v1366 = vadd.f32 %v1347, %v1355
    %v1367 = vadd.f32 %v1348, %v1355
    %v1368 = vadd.f32 %v1349, %v1355
    %v1369 = vadd.f32 %v1350, %v1355
    %v1370 = vadd.f32 %v1351, %v1355
    %v1371 = vadd.f32 %v1352, %v1355
    %v1372 = vadd.f32 %v1353, %v1355
    %v1373 = vmax.f32 %v1356, 0.0
    %v1374 = vmax.f32 %v1357, 0.0
    %v1375 = vmax.f32 %v1358, 0.0
    %v1376 = vmax.f32 %v1359, 0.0
    %v1377 = vmax.f32 %v1360, 0.0
    %v1378 = vmax.f32 %v1361, 0.0
    %v1379 = vmax.f32 %v1362, 0.0
    %v1380 = vmax.f32 %v1363, 0.0
    %v1381 = vmax.f32 %v1364, 0.0
    %v1382 = vmax.f32 %v1365, 0.0
    %v1383 = vmax.f32 %v1366, 0.0
    %v1384 = vmax.f32 %v1367, 0.0
    %v1385 = vmax.f32 %v1368, 0.0
    %v1386 = vmax.f32 %v1369, 0.0
    %v1387 = vmax.f32 %v1370, 0.0
    %v1388 = vmax.f32 %v1371, 0.0
    %v1389 = vmax.f32 %v1372, 0.0
    %v1407 = vrot.slane %v1373, 1
    %v1408 = vrot.slane %v1374, 1
    %v1409 = vsel %vm214, %v1407, %v1408
    %v1410 = vrot.slane %v1375, 1
    %v1411 = vsel %vm214, %v1408, %v1410
    %v1412 = vrot.slane %v1376, 1
    %v1413 = vsel %vm214, %v1410, %v1412
    %v1414 = vrot.slane %v1377, 1
    %v1415 = vsel %vm214, %v1412, %v1414
    %v1416 = vrot.slane %v1378, 1
    %v1417 = vsel %vm214, %v1414, %v1416
    %v1418 = vrot.slane %v1379, 1
    %v1419 = vsel %vm214, %v1416, %v1418
    %v1420 = vrot.slane %v1380, 1
    %v1421 = vsel %vm214, %v1418, %v1420
    %v1422 = vrot.slane %v1381, 1
    %v1423 = vsel %vm214, %v1420, %v1422
    %v1424 = vrot.slane %v1382, 1
    %v1425 = vsel %vm214, %v1422, %v1424
    %v1426 = vrot.slane %v1383, 1
    %v1427 = vsel %vm214, %v1424, %v1426
    %v1428 = vrot.slane %v1384, 1
    %v1429 = vsel %vm214, %v1426, %v1428
    %v1430 = vrot.slane %v1385, 1
    %v1431 = vsel %vm214, %v1428, %v1430
    %v1432 = vrot.slane %v1386, 1
    %v1433 = vsel %vm214, %v1430, %v1432
    %v1434 = vrot.slane %v1387, 1
    %v1435 = vsel %vm214, %v1432, %v1434
    %v1436 = vrot.slane %v1388, 1
    %v1437 = vsel %vm214, %v1434, %v1436
    %v1438 = vrot.slane %v1389, 1
    %v1439 = vsel %vm214, %v1436, %v1438
    %v1457 = vmax.f32 %v1373, %v1409
    %v1458 = vmax.f32 %v1374, %v1411
    %v1459 = vmax.f32 %v1375, %v1413
    %v1460 = vmax.f32 %v1376, %v1415
    %v1461 = vmax.f32 %v1377, %v1417
    %v1462 = vmax.f32 %v1378, %v1419
    %v1463 = vmax.f32 %v1379, %v1421
    %v1464 = vmax.f32 %v1380, %v1423
    %v1465 = vmax.f32 %v1381, %v1425
    %v1466 = vmax.f32 %v1382, %v1427
    %v1467 = vmax.f32 %v1383, %v1429
    %v1468 = vmax.f32 %v1384, %v1431
    %v1469 = vmax.f32 %v1385, %v1433
    %v1470 = vmax.f32 %v1386, %v1435
    %v1471 = vmax.f32 %v1387, %v1437
    %v1472 = vmax.f32 %v1388, %v1439
    %v1473 = vmax.f32 %v1389, %v1438
    %v1474 = vrot.slane %v1373, 2
    %v1475 = vrot.slane %v1374, 2
    %v1476 = vsel %vm318, %v1474, %v1475
    %v1477 = vrot.slane %v1375, 2
    %v1478 = vsel %vm318, %v1475, %v1477
    %v1479 = vrot.slane %v1376, 2
    %v1480 = vsel %vm318, %v1477, %v1479
    %v1481 = vrot.slane %v1377, 2
    %v1482 = vsel %vm318, %v1479, %v1481
    %v1483 = vrot.slane %v1378, 2
    %v1484 = vsel %vm318, %v1481, %v1483
    %v1485 = vrot.slane %v1379, 2
    %v1486 = vsel %vm318, %v1483, %v1485
    %v1487 = vrot.slane %v1380, 2
    %v1488 = vsel %vm318, %v1485, %v1487
    %v1489 = vrot.slane %v1381, 2
    %v1490 = vsel %vm318, %v1487, %v1489
    %v1491 = vrot.slane %v1382, 2
    %v1492 = vsel %vm318, %v1489, %v1491
    %v1493 = vrot.slane %v1383, 2
    %v1494 = vsel %vm318, %v1491, %v1493
    %v1495 = vrot.slane %v1384, 2
    %v1496 = vsel %vm318, %v1493, %v1495
    %v1497 = vrot.slane %v1385, 2
    %v1498 = vsel %vm318, %v1495, %v1497
    %v1499 = vrot.slane %v1386, 2
    %v1500 = vsel %vm318, %v1497, %v1499
    %v1501 = vrot.slane %v1387, 2
    %v1502 = vsel %vm318, %v1499, %v1501
    %v1503 = vrot.slane %v1388, 2
    %v1504 = vsel %vm318, %v1501, %v1503
    %v1505 = vrot.slane %v1389, 2
    %v1506 = vsel %vm318, %v1503, %v1505
    %v1524 = vmax.f32 %v1457, %v1476
    %v1525 = vmax.f32 %v1458, %v1478
    %v1526 = vmax.f32 %v1459, %v1480
    %v1527 = vmax.f32 %v1460, %v1482
    %v1528 = vmax.f32 %v1461, %v1484
    %v1529 = vmax.f32 %v1462, %v1486
    %v1530 = vmax.f32 %v1463, %v1488
    %v1531 = vmax.f32 %v1464, %v1490
    %v1532 = vmax.f32 %v1465, %v1492
    %v1533 = vmax.f32 %v1466, %v1494
    %v1534 = vmax.f32 %v1467, %v1496
    %v1535 = vmax.f32 %v1468, %v1498
    %v1536 = vmax.f32 %v1469, %v1500
    %v1537 = vmax.f32 %v1470, %v1502
    %v1538 = vmax.f32 %v1471, %v1504
    %v1539 = vmax.f32 %v1472, %v1506
    %v1540 = vmax.f32 %v1473, %v1505
    %1541 = vst.msk [vmem:[#allocation2] sm:$0xff] %vm573, %v1524
    %1542 = vst.msk [vmem:[#allocation2 + $0x8] sm:$0xff] %vm573, %v1525
    %1543 = vst.msk [vmem:[#allocation2 + $0x10] sm:$0xff] %vm573, %v1526
    %1544 = vst.msk [vmem:[#allocation2 + $0x18] sm:$0xff] %vm573, %v1527
    %1545 = vst.msk [vmem:[#allocation2 + $0x20] sm:$0xff] %vm573, %v1528
    %1546 = vst.msk [vmem:[#allocation2 + $0x28] sm:$0xff] %vm573, %v1529
    %1547 = vst.msk [vmem:[#allocation2 + $0x30] sm:$0xff] %vm573, %v1530
    %1548 = vst.msk [vmem:[#allocation2 + $0x38] sm:$0xff] %vm573, %v1531
    %1549 = vst.msk [vmem:[#allocation2 + $0x40] sm:$0xff] %vm573, %v1532
    %1550 = vst.msk [vmem:[#allocation2 + $0x48] sm:$0xff] %vm573, %v1533
    %1551 = vst.msk [vmem:[#allocation2 + $0x50] sm:$0xff] %vm573, %v1534
    %1552 = vst.msk [vmem:[#allocation2 + $0x58] sm:$0xff] %vm573, %v1535
    %1553 = vst.msk [vmem:[#allocation2 + $0x60] sm:$0xff] %vm573, %v1536
    %1554 = vst.msk [vmem:[#allocation2 + $0x68] sm:$0xff] %vm573, %v1537
    %1555 = vst.msk [vmem:[#allocation2 + $0x70] sm:$0xff] %vm573, %v1538
    %1556 = vst.msk [vmem:[#allocation2 + $0x78] sm:$0xff] %vm573, %v1539
    %1557 = vst.msk [vmem:[#allocation2 + $0x80] sm:$0x3] %vm590, %v1540
    %v1558 = vld [vmem:[#allocation2] ss:$3 sm:$0xff]
    %v1559 = vld [vmem:[%s593] ss:$3 sm:$0xff]
    %v1560 = vld [vmem:[%s595] ss:$3 sm:$0xff]
    %v1561 = vld [vmem:[%s597] ss:$3 sm:$0xff]
    %v1562 = vld [vmem:[%s599] ss:$3 sm:$0xff]
    %v1563 = vld [vmem:[%s601] ss:$3 sm:$0xf]
    %v1564 = vld [vmem:[%s3 + $0x20] sm:$0xff]
    %v1565 = vld [vmem:[%s3 + $0x28] sm:$0xff]
    %v1566 = vld [vmem:[%s3 + $0x30] sm:$0xff]
    %v1567 = vld [vmem:[%s3 + $0x38] sm:$0xff]
    %v1574 = vrot.slane %v1558, 1
    %v1575 = vrot.slane %v1559, 1
    %v1576 = vsel %vm214, %v1574, %v1575
    %v1577 = vrot.slane %v1560, 1
    %v1578 = vsel %vm214, %v1575, %v1577
    %v1579 = vrot.slane %v1561, 1
    %v1580 = vsel %vm214, %v1577, %v1579
    %v1581 = vrot.slane %v1562, 1
    %v1582 = vsel %vm214, %v1579, %v1581
    %v1583 = vrot.slane %v1563, 1
    %v1584 = vsel %vm214, %v1581, %v1583
    %v1585 = vsel %vm573, %v1576, 0
    %v1587 = vsel %vm573, %v1578, 0
    %v1589 = vsel %vm573, %v1580, 0
    %v1591 = vsel %vm573, %v1582, 0
    %v1593 = vsel %vm573, %v1584, 0
    %v1595 = vsel %vm573, %v1583, 0
    %1597 = vmatpush.msra.mxu0 0.0
    %1598 = vmatpush.msra.mxu0 0.0
    %1599 = vmatpush.msra.mxu0 0.0
    %1600 = vmatpush.msra.mxu0 0.0
    %1601 = vmatpush.msra.mxu0 0.0
    %1602 = vmatpush.msra.mxu0 0.0
    %1603 = vmatpush.msra.mxu0 0.0
    %1604 = vmatpush.msra.mxu0 0.0
    %1605 = vmatpush.msra.mxu0 0.0
    %1606 = vmatpush.msra.mxu0 0.0
    %1607 = vmatpush.msra.mxu0 0.0
    %1608 = vmatpush.msra.mxu0 0.0
    %1609 = vmatpush.msra.mxu0 0.0
    %1610 = vmatpush.msra.mxu0 0.0
    %1611 = vmatpush.msra.mxu0 %v1567
    %1612 = vmatpush.msra.mxu0 %v1566
    %1613 = vmatmul.f32.gmra.mxu0 %v1585
    %v1614 = vpop.f32.mrf.mxu0
    %v1615 = vadd.f32 0.0, %v1614
    %1616 = vmatmul.f32.gmra.mxu0 %v1587
    %v1617 = vpop.f32.mrf.mxu0
    %v1618 = vadd.f32 0.0, %v1617
    %1619 = vmatmul.f32.gmra.mxu0 %v1589
    %v1620 = vpop.f32.mrf.mxu0
    %v1621 = vadd.f32 0.0, %v1620
    %1622 = vmatmul.f32.gmra.mxu0 %v1591
    %v1623 = vpop.f32.mrf.mxu0
    %v1624 = vadd.f32 0.0, %v1623
    %1625 = vmatmul.f32.gmra.mxu0 %v1593
    %v1626 = vpop.f32.mrf.mxu0
    %v1627 = vadd.f32 0.0, %v1626
    %1628 = vmatmul.f32.gmra.mxu0 %v1595
    %v1629 = vpop.f32.mrf.mxu0
    %v1630 = vadd.f32 0.0, %v1629
    %1631 = vdwg.mxu0
    %v1632 = vsel %vm573, %v1558, 0
    %v1634 = vsel %vm573, %v1559, 0
    %v1636 = vsel %vm573, %v1560, 0
    %v1638 = vsel %vm573, %v1561, 0
    %v1640 = vsel %vm573, %v1562, 0
    %v1642 = vsel %vm573, %v1563, 0
    %1644 = vmatpush.msra.mxu0 0.0
    %1645 = vmatpush.msra.mxu0 0.0
    %1646 = vmatpush.msra.mxu0 0.0
    %1647 = vmatpush.msra.mxu0 0.0
    %1648 = vmatpush.msra.mxu0 0.0
    %1649 = vmatpush.msra.mxu0 0.0
    %1650 = vmatpush.msra.mxu0 0.0
    %1651 = vmatpush.msra.mxu0 0.0
    %1652 = vmatpush.msra.mxu0 0.0
    %1653 = vmatpush.msra.mxu0 0.0
    %1654 = vmatpush.msra.mxu0 0.0
    %1655 = vmatpush.msra.mxu0 0.0
    %1656 = vmatpush.msra.mxu0 0.0
    %1657 = vmatpush.msra.mxu0 0.0
    %1658 = vmatpush.msra.mxu0 %v1565
    %1659 = vmatpush.msra.mxu0 %v1564
    %1660 = vmatmul.f32.gmra.mxu0 %v1632
    %v1661 = vpop.f32.mrf.mxu0
    %v1662 = vadd.f32 %v1615, %v1661
    %1663 = vmatmul.f32.gmra.mxu0 %v1634
    %v1664 = vpop.f32.mrf.mxu0
    %v1665 = vadd.f32 %v1618, %v1664
    %1666 = vmatmul.f32.gmra.mxu0 %v1636
    %v1667 = vpop.f32.mrf.mxu0
    %v1668 = vadd.f32 %v1621, %v1667
    %1669 = vmatmul.f32.gmra.mxu0 %v1638
    %v1670 = vpop.f32.mrf.mxu0
    %v1671 = vadd.f32 %v1624, %v1670
    %1672 = vmatmul.f32.gmra.mxu0 %v1640
    %v1673 = vpop.f32.mrf.mxu0
    %v1674 = vadd.f32 %v1627, %v1673
    %1675 = vmatmul.f32.gmra.mxu0 %v1642
    %v1676 = vpop.f32.mrf.mxu0
    %v1677 = vadd.f32 %v1630, %v1676
    %1678 = vdwg.mxu0
    %v1679 = vld [vmem:[%s3 + $0x40] sm:$0xff]
    %v1680 = vld [vmem:[%s3 + $0x48] sm:$0xff]
    %v1681 = vrot.slane %v1558, 2
    %v1682 = vrot.slane %v1559, 2
    %v1683 = vsel %vm318, %v1681, %v1682
    %v1684 = vrot.slane %v1560, 2
    %v1685 = vsel %vm318, %v1682, %v1684
    %v1686 = vrot.slane %v1561, 2
    %v1687 = vsel %vm318, %v1684, %v1686
    %v1688 = vrot.slane %v1562, 2
    %v1689 = vsel %vm318, %v1686, %v1688
    %v1690 = vrot.slane %v1563, 2
    %v1691 = vsel %vm318, %v1688, %v1690
    %v1692 = vsel %vm573, %v1683, 0
    %v1694 = vsel %vm573, %v1685, 0
    %v1696 = vsel %vm573, %v1687, 0
    %v1698 = vsel %vm573, %v1689, 0
    %v1700 = vsel %vm573, %v1691, 0
    %v1702 = vsel %vm573, %v1690, 0
    %1704 = vmatpush.msra.mxu0 0.0
    %1705 = vmatpush.msra.mxu0 0.0
    %1706 = vmatpush.msra.mxu0 0.0
    %1707 = vmatpush.msra.mxu0 0.0
    %1708 = vmatpush.msra.mxu0 0.0
    %1709 = vmatpush.msra.mxu0 0.0
    %1710 = vmatpush.msra.mxu0 0.0
    %1711 = vmatpush.msra.mxu0 0.0
    %1712 = vmatpush.msra.mxu0 0.0
    %1713 = vmatpush.msra.mxu0 0.0
    %1714 = vmatpush.msra.mxu0 0.0
    %1715 = vmatpush.msra.mxu0 0.0
    %1716 = vmatpush.msra.mxu0 0.0
    %1717 = vmatpush.msra.mxu0 0.0
    %1718 = vmatpush.msra.mxu0 %v1680
    %1719 = vmatpush.msra.mxu0 %v1679
    %1720 = vmatmul.f32.gmra.mxu0 %v1692
    %v1721 = vpop.f32.mrf.mxu0
    %v1722 = vadd.f32 0.0, %v1721
    %1723 = vmatmul.f32.gmra.mxu0 %v1694
    %v1724 = vpop.f32.mrf.mxu0
    %v1725 = vadd.f32 0.0, %v1724
    %1726 = vmatmul.f32.gmra.mxu0 %v1696
    %v1727 = vpop.f32.mrf.mxu0
    %v1728 = vadd.f32 0.0, %v1727
    %1729 = vmatmul.f32.gmra.mxu0 %v1698
    %v1730 = vpop.f32.mrf.mxu0
    %v1731 = vadd.f32 0.0, %v1730
    %1732 = vmatmul.f32.gmra.mxu0 %v1700
    %v1733 = vpop.f32.mrf.mxu0
    %v1734 = vadd.f32 0.0, %v1733
    %1735 = vmatmul.f32.gmra.mxu0 %v1702
    %v1736 = vpop.f32.mrf.mxu0
    %v1737 = vadd.f32 0.0, %v1736
    %1738 = vdwg.mxu0
    %v1739 = vadd.f32 %v1662, %v1722
    %v1740 = vadd.f32 %v1665, %v1725
    %v1741 = vadd.f32 %v1668, %v1728
    %v1742 = vadd.f32 %v1671, %v1731
    %v1743 = vadd.f32 %v1674, %v1734
    %v1744 = vadd.f32 %v1677, %v1737
    %v1745 = vld [vmem:[%s3 + $0x50] sm:$0x1]
    %v1746 = vperm.slane %v1745, 0
    %v1747 = vadd.f32 %v1739, %v1746
    %v1748 = vadd.f32 %v1740, %v1746
    %v1749 = vadd.f32 %v1741, %v1746
    %v1750 = vadd.f32 %v1742, %v1746
    %v1751 = vadd.f32 %v1743, %v1746
    %v1752 = vadd.f32 %v1744, %v1746
    %v1753 = vmax.f32 %v1747, 0.0
    %v1754 = vmax.f32 %v1748, 0.0
    %v1755 = vmax.f32 %v1749, 0.0
    %v1756 = vmax.f32 %v1750, 0.0
    %v1757 = vmax.f32 %v1751, 0.0
    %v1758 = vmax.f32 %v1752, 0.0
    %v1765 = vrot.slane %v1753, 1
    %v1766 = vrot.slane %v1754, 1
    %v1767 = vsel %vm214, %v1765, %v1766
    %v1768 = vrot.slane %v1755, 1
    %v1769 = vsel %vm214, %v1766, %v1768
    %v1770 = vrot.slane %v1756, 1
    %v1771 = vsel %vm214, %v1768, %v1770
    %v1772 = vrot.slane %v1757, 1
    %v1773 = vsel %vm214, %v1770, %v1772
    %v1774 = vrot.slane %v1758, 1
    %v1775 = vsel %vm214, %v1772, %v1774
    %v1781 = vmax.f32 %v1753, %v1767
    %v1782 = vmax.f32 %v1754, %v1769
    %v1783 = vmax.f32 %v1755, %v1771
    %v1784 = vmax.f32 %v1756, %v1773
    %v1785 = vmax.f32 %v1757, %v1775
    %v1786 = vrot.slane %v1753, 2
    %v1787 = vrot.slane %v1754, 2
    %v1788 = vsel %vm318, %v1786, %v1787
    %v1789 = vrot.slane %v1755, 2
    %v1790 = vsel %vm318, %v1787, %v1789
    %v1791 = vrot.slane %v1756, 2
    %v1792 = vsel %vm318, %v1789, %v1791
    %v1793 = vrot.slane %v1757, 2
    %v1794 = vsel %vm318, %v1791, %v1793
    %v1795 = vrot.slane %v1758, 2
    %v1796 = vsel %vm318, %v1793, %v1795
    %v1802 = vmax.f32 %v1781, %v1788
    %v1803 = vmax.f32 %v1782, %v1790
    %v1804 = vmax.f32 %v1783, %v1792
    %v1805 = vmax.f32 %v1784, %v1794
    %v1806 = vmax.f32 %v1785, %v1796
    %1807 = vst.msk [vmem:[#allocation3] sm:$0xff] %vm846, %v1802
    %1808 = vst.msk [vmem:[#allocation3 + $0x8] sm:$0xff] %vm846, %v1803
    %1809 = vst.msk [vmem:[#allocation3 + $0x10] sm:$0xff] %vm846, %v1804
    %1810 = vst.msk [vmem:[#allocation3 + $0x18] sm:$0xff] %vm846, %v1805
    %1811 = vst.msk [vmem:[#allocation3 + $0x20] sm:$0xff] %vm846, %v1806
    %v1812 = vld [vmem:[#allocation3] ss:$3 sm:$0xff]
    %v1813 = vld [vmem:[%s853] ss:$3 sm:$0x3f]
    %v1814 = vld [vmem:[%s3 + $0x58] sm:$0xff]
    %v1815 = vld [vmem:[%s3 + $0x60] sm:$0xff]
    %v1816 = vld [vmem:[%s3 + $0x68] sm:$0xff]
    %v1817 = vld [vmem:[%s3 + $0x70] sm:$0xff]
    %v1818 = vld [vmem:[%s3 + $0x78] sm:$0xff]
    %v1819 = vld [vmem:[%s3 + $0x80] sm:$0xff]
    %v1820 = vld [vmem:[%s3 + $0x88] sm:$0xff]
    %v1821 = vld [vmem:[%s3 + $0x90] sm:$0xff]
    %v1824 = vrot.slane %v1812, 1
    %v1825 = vrot.slane %v1813, 1
    %v1826 = vsel %vm214, %v1824, %v1825
    %v1827 = vsel %vm846, %v1826, 0
    %v1829 = vsel %vm846, %v1825, 0
    %1831 = vmatpush.msra.mxu0 0.0
    %1832 = vmatpush.msra.mxu0 0.0
    %1833 = vmatpush.msra.mxu0 0.0
    %1834 = vmatpush.msra.mxu0 0.0
    %1835 = vmatpush.msra.mxu0 0.0
    %1836 = vmatpush.msra.mxu0 0.0
    %1837 = vmatpush.msra.mxu0 0.0
    %1838 = vmatpush.msra.mxu0 0.0
    %1839 = vmatpush.msra.mxu0 0.0
    %1840 = vmatpush.msra.mxu0 0.0
    %1841 = vmatpush.msra.mxu0 0.0
    %1842 = vmatpush.msra.mxu0 0.0
    %1843 = vmatpush.msra.mxu0 %v1821
    %1844 = vmatpush.msra.mxu0 %v1820
    %1845 = vmatpush.msra.mxu0 %v1819
    %1846 = vmatpush.msra.mxu0 %v1818
    %1847 = vmatmul.f32.gmra.mxu0 %v1827
    %v1848 = vpop.f32.mrf.mxu0
    %v1849 = vadd.f32 0.0, %v1848
    %1850 = vmatmul.f32.gmra.mxu0 %v1829
    %v1851 = vpop.f32.mrf.mxu0
    %v1852 = vadd.f32 0.0, %v1851
    %1853 = vdwg.mxu0
    %v1854 = vsel %vm846, %v1812, 0
    %v1856 = vsel %vm846, %v1813, 0
    %1858 = vmatpush.msra.mxu0 0.0
    %1859 = vmatpush.msra.mxu0 0.0
    %1860 = vmatpush.msra.mxu0 0.0
    %1861 = vmatpush.msra.mxu0 0.0
    %1862 = vmatpush.msra.mxu0 0.0
    %1863 = vmatpush.msra.mxu0 0.0
    %1864 = vmatpush.msra.mxu0 0.0
    %1865 = vmatpush.msra.mxu0 0.0
    %1866 = vmatpush.msra.mxu0 0.0
    %1867 = vmatpush.msra.mxu0 0.0
    %1868 = vmatpush.msra.mxu0 0.0
    %1869 = vmatpush.msra.mxu0 0.0
    %1870 = vmatpush.msra.mxu0 %v1817
    %1871 = vmatpush.msra.mxu0 %v1816
    %1872 = vmatpush.msra.mxu0 %v1815
    %1873 = vmatpush.msra.mxu0 %v1814
    %1874 = vmatmul.f32.gmra.mxu0 %v1854
    %v1875 = vpop.f32.mrf.mxu0
    %v1876 = vadd.f32 %v1849, %v1875
    %1877 = vmatmul.f32.gmra.mxu0 %v1856
    %v1878 = vpop.f32.mrf.mxu0
    %v1879 = vadd.f32 %v1852, %v1878
    %1880 = vdwg.mxu0
    %v1881 = vld [vmem:[%s3 + $0x98] sm:$0xff]
    %v1882 = vld [vmem:[%s3 + $0xa0] sm:$0xff]
    %v1883 = vld [vmem:[%s3 + $0xa8] sm:$0xff]
    %v1884 = vld [vmem:[%s3 + $0xb0] sm:$0xff]
    %v1885 = vrot.slane %v1812, 2
    %v1886 = vrot.slane %v1813, 2
    %v1887 = vsel %vm318, %v1885, %v1886
    %v1888 = vsel %vm846, %v1887, 0
    %v1890 = vsel %vm846, %v1886, 0
    %1892 = vmatpush.msra.mxu0 0.0
    %1893 = vmatpush.msra.mxu0 0.0
    %1894 = vmatpush.msra.mxu0 0.0
    %1895 = vmatpush.msra.mxu0 0.0
    %1896 = vmatpush.msra.mxu0 0.0
    %1897 = vmatpush.msra.mxu0 0.0
    %1898 = vmatpush.msra.mxu0 0.0
    %1899 = vmatpush.msra.mxu0 0.0
    %1900 = vmatpush.msra.mxu0 0.0
    %1901 = vmatpush.msra.mxu0 0.0
    %1902 = vmatpush.msra.mxu0 0.0
    %1903 = vmatpush.msra.mxu0 0.0
    %1904 = vmatpush.msra.mxu0 %v1884
    %1905 = vmatpush.msra.mxu0 %v1883
    %1906 = vmatpush.msra.mxu0 %v1882
    %1907 = vmatpush.msra.mxu0 %v1881
    %1908 = vmatmul.f32.gmra.mxu0 %v1888
    %v1909 = vpop.f32.mrf.mxu0
    %v1910 = vadd.f32 0.0, %v1909
    %1911 = vmatmul.f32.gmra.mxu0 %v1890
    %v1912 = vpop.f32.mrf.mxu0
    %v1913 = vadd.f32 0.0, %v1912
    %1914 = vdwg.mxu0
    %v1915 = vadd.f32 %v1876, %v1910
    %v1916 = vadd.f32 %v1879, %v1913
    %v1917 = vld [vmem:[%s3 + $0xb8] sm:$0x1]
    %v1918 = vperm.slane %v1917, 0
    %v1919 = vadd.f32 %v1915, %v1918
    %v1920 = vadd.f32 %v1916, %v1918
    %v1921 = vmax.f32 %v1919, 0.0
    %v1922 = vmax.f32 %v1920, 0.0
    %v1925 = vrot.slane %v1921, 1
    %v1926 = vrot.slane %v1922, 1
    %v1927 = vsel %vm214, %v1925, %v1926
    %v1930 = vmax.f32 %v1921, %v1927
    %v1931 = vmax.f32 %v1922, %v1926
    %v1932 = vrot.slane %v1921, 2
    %v1933 = vrot.slane %v1922, 2
    %v1934 = vsel %vm318, %v1932, %v1933
    %v1937 = vmax.f32 %v1930, %v1934
    %v1938 = vmax.f32 %v1931, %v1933
    %1939 = vst.msk [vmem:[#allocation4] sm:$0xff] %vm980, %v1937
    %1940 = vst.msk [vmem:[#allocation4 + $0x8] sm:$0x3] %vm982, %v1938
    %v1941 = vld [vmem:[#allocation4] ss:$3 sm:$0xf]
    %v1943 = vsel %vm980, %v1941, 0
    %1945 = vmatpush.msra.mxu0 0.0
    %1946 = vmatpush.msra.mxu0 0.0
    %1947 = vmatpush.msra.mxu0 0.0
    %1948 = vmatpush.msra.mxu0 0.0
    %1949 = vmatpush.msra.mxu0 0.0
    %1950 = vmatpush.msra.mxu0 0.0
    %1951 = vmatpush.msra.mxu0 0.0
    %1952 = vmatpush.msra.mxu0 0.0
    %1953 = vmatpush.msra.mxu0 %v25
    %1954 = vmatpush.msra.mxu0 %v24
    %1955 = vmatpush.msra.mxu0 %v23
    %1956 = vmatpush.msra.mxu0 %v22
    %1957 = vmatpush.msra.mxu0 %v21
    %1958 = vmatpush.msra.mxu0 %v20
    %1959 = vmatpush.msra.mxu0 %v19
    %1960 = vmatpush.msra.mxu0 %v18
    %1961 = vmatmul.f32.gmra.mxu0 %v1943
    %v1962 = vpop.f32.mrf.mxu0
    %v1963 = vadd.f32 %v985, %v1962
    %1964 = vdwg.mxu0
    %v1966 = vrot.slane %v1963, 7
    %vm1968 = vcmask 1040384
    %v1969 = vsel %vm1968, %v1007, %v1966
    %v1971 = vrot.slane %v1007, 1
    %v1973 = vsel %vm1968, %v1971, %v1963
    %v1974 = vrot.slane %v1007, 2
    %v1976 = vrot.slane %v1963, 1
    %v1978 = vsel %vm1968, %v1974, %v1976
    %v1979 = vrot.slane %v1007, 3
    %v1981 = vrot.slane %v1963, 2
    %v1983 = vsel %vm1968, %v1979, %v1981
    %v1984 = vld [vmem:[%s1] sm:$0x3]
    %v1985 = vld [vmem:[%s2] sm:$0x3]
    %s1986 = scalar_lea.vmem %s1, 2
    %v1987 = vld [vmem:[%s1986] sm:$0x3]
    %s1988 = scalar_lea.vmem %s2, 2
    %v1989 = vld [vmem:[%s1988] sm:$0x3]
    %v1991 = vsel %vm846, %v1984, 0
    %1993 = vmatpush.msra.mxu0 0.0
    %1994 = vmatpush.msra.mxu0 0.0
    %1995 = vmatpush.msra.mxu0 0.0
    %1996 = vmatpush.msra.mxu0 0.0
    %1997 = vmatpush.msra.mxu0 0.0
    %1998 = vmatpush.msra.mxu0 0.0
    %1999 = vmatpush.msra.mxu0 0.0
    %2000 = vmatpush.msra.mxu0 0.0
    %2001 = vmatpush.msra.mxu0 0.0
    %2002 = vmatpush.msra.mxu0 0.0
    %2003 = vmatpush.msra.mxu0 0.0
    %2004 = vmatpush.msra.mxu0 0.0
    %2005 = vmatpush.msra.mxu0 %v29
    %2006 = vmatpush.msra.mxu0 %v28
    %2007 = vmatpush.msra.mxu0 %v27
    %2008 = vmatpush.msra.mxu0 %v26
    %2009 = vmatmul.f32.gmra.mxu0 %v1991
    %v2010 = vpop.f32.mrf.mxu0
    %v2011 = vadd.f32 0.0, %v2010
    %2012 = vdwg.mxu0
    %v2013 = vadd.f32 %v1969, %v2011
    %v2014 = vxor.u32 %v2013, 2147483648
    %v2015 = vmul.f32 %v2014, 1.442695
    %v2016 = vpow.pop %v2015
    %v2017 = vadd.f32 %v2016, 1.0
    %v2018 = vrcp.pop %v2017
    %v2019 = vmul.f32 %v2017, %v2018
    %v2020 = vsub.f32 1.0, %v2019
    %v2021 = vmul.f32 %v2018, %v2020
    %v2022 = vadd.f32 %v2018, %v2021
    %vm2023 = vweird.f32 %v2017
    %vm2024 = vweird.f32 %v2018
    %vm2025 = vmor %vm2023, %vm2024
    %v2026 = vsel %vm2025, %v2018, %v2022
    %v2027 = vand.u32 2147483647, %v2017
    %vm2028 = vcmp.eq.f32.partialorder %v2027, 8.507059e+37
    %v2029 = vand.u32 %v2017, 2147483648
    %v2030 = vor.u32 1.1754944e-38, %v2029
    %v2031 = vsel %vm2028, %v2030, %v2026
    %v2032 = vmul.f32 1.0, %v2031
    %v2033 = vtanh.pop %v2013
    %2035 = vrot.lane.b32.xlu0 %v1985, 32
    %v2036 = vpop.permute.xlu0 %2035
    %v2038 = vmul.f32 %v2032, %v2036
    %2040 = vrot.lane.b32.xlu0 %v2033, 64
    %v2041 = vpop.permute.xlu0 %2040
    %v2043 = vmul.f32 %v2032, %v2041
    %2045 = vrot.lane.b32.xlu0 %v2043, 32
    %v2046 = vpop.permute.xlu0 %2045
    %v2048 = vadd.f32 %v2038, %v2046
    %v2049 = vtanh.pop %v2048
    %2051 = vrot.lane.b32.xlu0 %v2049, 64
    %v2052 = vpop.permute.xlu0 %2051
    %v2054 = vmul.f32 %v2032, %v2052
    %2056 = vrot.lane.b32.xlu0 %v2054, 32
    %v2057 = vpop.permute.xlu0 %2056
    %v2058 = vsel %vm846, %v2057, 0
    %2060 = vmatpush.msra.mxu0 0.0
    %2061 = vmatpush.msra.mxu0 0.0
    %2062 = vmatpush.msra.mxu0 0.0
    %2063 = vmatpush.msra.mxu0 0.0
    %2064 = vmatpush.msra.mxu0 0.0
    %2065 = vmatpush.msra.mxu0 0.0
    %2066 = vmatpush.msra.mxu0 0.0
    %2067 = vmatpush.msra.mxu0 0.0
    %2068 = vmatpush.msra.mxu0 0.0
    %2069 = vmatpush.msra.mxu0 0.0
    %2070 = vmatpush.msra.mxu0 0.0
    %2071 = vmatpush.msra.mxu0 0.0
    %2072 = vmatpush.msra.mxu0 %v29
    %2073 = vmatpush.msra.mxu0 %v28
    %2074 = vmatpush.msra.mxu0 %v27
    %2075 = vmatpush.msra.mxu0 %v26
    %2076 = vmatmul.f32.gmra.mxu0 %v2058
    %v2077 = vpop.f32.mrf.mxu0
    %v2078 = vadd.f32 0.0, %v2077
    %2079 = vdwg.mxu0
    %v2080 = vadd.f32 %v1973, %v2078
    %v2081 = vxor.u32 %v2080, 2147483648
    %v2082 = vmul.f32 %v2081, 1.442695
    %v2083 = vpow.pop %v2082
    %v2084 = vadd.f32 %v2083, 1.0
    %v2085 = vrcp.pop %v2084
    %v2086 = vmul.f32 %v2084, %v2085
    %v2087 = vsub.f32 1.0, %v2086
    %v2088 = vmul.f32 %v2085, %v2087
    %v2089 = vadd.f32 %v2085, %v2088
    %vm2090 = vweird.f32 %v2084
    %vm2091 = vweird.f32 %v2085
    %vm2092 = vmor %vm2090, %vm2091
    %v2093 = vsel %vm2092, %v2085, %v2089
    %v2094 = vand.u32 2147483647, %v2084
    %vm2095 = vcmp.eq.f32.partialorder %v2094, 8.507059e+37
    %v2096 = vand.u32 %v2084, 2147483648
    %v2097 = vor.u32 1.1754944e-38, %v2096
    %v2098 = vsel %vm2095, %v2097, %v2093
    %v2099 = vmul.f32 1.0, %v2098
    %v2100 = vtanh.pop %v2080
    %v2101 = vmul.f32 %v2099, %v2048
    %2103 = vrot.lane.b32.xlu0 %v2100, 64
    %v2104 = vpop.permute.xlu0 %2103
    %v2106 = vmul.f32 %v2099, %v2104
    %2108 = vrot.lane.b32.xlu0 %v2106, 32
    %v2109 = vpop.permute.xlu0 %2108
    %v2111 = vadd.f32 %v2101, %v2109
    %v2112 = vtanh.pop %v2111
    %2114 = vrot.lane.b32.xlu0 %v2112, 64
    %v2115 = vpop.permute.xlu0 %2114
    %v2117 = vmul.f32 %v2099, %v2115
    %2120 = vrot.lane.b32.xlu0 %v1987, 32
    %v2121 = vpop.permute.xlu0 %2120
    %v2123 = vsel %vm846, %v2057, %v2121
    %v2124 = vperm.slane %v39, 0
    %v2126 = vsel %vm980, %v2123, 0
    %2128 = vmatpush.msra.mxu0 0.0
    %2129 = vmatpush.msra.mxu0 0.0
    %2130 = vmatpush.msra.mxu0 0.0
    %2131 = vmatpush.msra.mxu0 0.0
    %2132 = vmatpush.msra.mxu0 0.0
    %2133 = vmatpush.msra.mxu0 0.0
    %2134 = vmatpush.msra.mxu0 0.0
    %2135 = vmatpush.msra.mxu0 0.0
    %2136 = vmatpush.msra.mxu0 %v38
    %2137 = vmatpush.msra.mxu0 %v37
    %2138 = vmatpush.msra.mxu0 %v36
    %2139 = vmatpush.msra.mxu0 %v35
    %2140 = vmatpush.msra.mxu0 %v34
    %2141 = vmatpush.msra.mxu0 %v33
    %2142 = vmatpush.msra.mxu0 %v32
    %2143 = vmatpush.msra.mxu0 %v31
    %2144 = vmatmul.f32.gmra.mxu0 %v2126
    %v2145 = vpop.f32.mrf.mxu0
    %v2146 = vadd.f32 %v2124, %v2145
    %2147 = vdwg.mxu0
    %v2148 = vxor.u32 %v2146, 2147483648
    %v2149 = vmul.f32 %v2148, 1.442695
    %v2150 = vpow.pop %v2149
    %v2151 = vadd.f32 %v2150, 1.0
    %v2152 = vrcp.pop %v2151
    %v2153 = vmul.f32 %v2151, %v2152
    %v2154 = vsub.f32 1.0, %v2153
    %v2155 = vmul.f32 %v2152, %v2154
    %v2156 = vadd.f32 %v2152, %v2155
    %vm2157 = vweird.f32 %v2151
    %vm2158 = vweird.f32 %v2152
    %vm2159 = vmor %vm2157, %vm2158
    %v2160 = vsel %vm2159, %v2152, %v2156
    %v2161 = vand.u32 2147483647, %v2151
    %vm2162 = vcmp.eq.f32.partialorder %v2161, 8.507059e+37
    %v2163 = vand.u32 %v2151, 2147483648
    %v2164 = vor.u32 1.1754944e-38, %v2163
    %v2165 = vsel %vm2162, %v2164, %v2160
    %v2166 = vmul.f32 1.0, %v2165
    %v2167 = vtanh.pop %v2146
    %2169 = vrot.lane.b32.xlu0 %v1989, 32
    %v2170 = vpop.permute.xlu0 %2169
    %v2172 = vmul.f32 %v2166, %v2170
    %2174 = vrot.lane.b32.xlu0 %v2167, 64
    %v2175 = vpop.permute.xlu0 %2174
    %v2177 = vmul.f32 %v2166, %v2175
    %2179 = vrot.lane.b32.xlu0 %v2177, 32
    %v2180 = vpop.permute.xlu0 %2179
    %v2182 = vadd.f32 %v2172, %v2180
    %v2183 = vtanh.pop %v2182
    %2185 = vrot.lane.b32.xlu0 %v2183, 64
    %v2186 = vpop.permute.xlu0 %2185
    %v2188 = vmul.f32 %v2166, %v2186
    %2190 = vrot.lane.b32.xlu0 %v2117, 32
    %v2191 = vpop.permute.xlu0 %2190
    %v2192 = vsel %vm846, %v2191, 0
    %2194 = vmatpush.msra.mxu0 0.0
    %2195 = vmatpush.msra.mxu0 0.0
    %2196 = vmatpush.msra.mxu0 0.0
    %2197 = vmatpush.msra.mxu0 0.0
    %2198 = vmatpush.msra.mxu0 0.0
    %2199 = vmatpush.msra.mxu0 0.0
    %2200 = vmatpush.msra.mxu0 0.0
    %2201 = vmatpush.msra.mxu0 0.0
    %2202 = vmatpush.msra.mxu0 0.0
    %2203 = vmatpush.msra.mxu0 0.0
    %2204 = vmatpush.msra.mxu0 0.0
    %2205 = vmatpush.msra.mxu0 0.0
    %2206 = vmatpush.msra.mxu0 %v29
    %2207 = vmatpush.msra.mxu0 %v28
    %2208 = vmatpush.msra.mxu0 %v27
    %2209 = vmatpush.msra.mxu0 %v26
    %2210 = vmatmul.f32.gmra.mxu0 %v2192
    %v2211 = vpop.f32.mrf.mxu0
    %v2212 = vadd.f32 0.0, %v2211
    %2213 = vdwg.mxu0
    %v2214 = vadd.f32 %v1978, %v2212
    %v2215 = vxor.u32 %v2214, 2147483648
    %v2216 = vmul.f32 %v2215, 1.442695
    %v2217 = vpow.pop %v2216
    %v2218 = vadd.f32 %v2217, 1.0
    %v2219 = vrcp.pop %v2218
    %v2220 = vmul.f32 %v2218, %v2219
    %v2221 = vsub.f32 1.0, %v2220
    %v2222 = vmul.f32 %v2219, %v2221
    %v2223 = vadd.f32 %v2219, %v2222
    %vm2224 = vweird.f32 %v2218
    %vm2225 = vweird.f32 %v2219
    %vm2226 = vmor %vm2224, %vm2225
    %v2227 = vsel %vm2226, %v2219, %v2223
    %v2228 = vand.u32 2147483647, %v2218
    %vm2229 = vcmp.eq.f32.partialorder %v2228, 8.507059e+37
    %v2230 = vand.u32 %v2218, 2147483648
    %v2231 = vor.u32 1.1754944e-38, %v2230
    %v2232 = vsel %vm2229, %v2231, %v2227
    %v2233 = vmul.f32 1.0, %v2232
    %v2234 = vtanh.pop %v2214
    %v2235 = vmul.f32 %v2233, %v2111
    %2237 = vrot.lane.b32.xlu0 %v2234, 64
    %v2238 = vpop.permute.xlu0 %2237
    %v2240 = vmul.f32 %v2233, %v2238
    %2242 = vrot.lane.b32.xlu0 %v2240, 32
    %v2243 = vpop.permute.xlu0 %2242
    %v2245 = vadd.f32 %v2235, %v2243
    %v2246 = vtanh.pop %v2245
    %2248 = vrot.lane.b32.xlu0 %v2246, 64
    %v2249 = vpop.permute.xlu0 %2248
    %v2251 = vmul.f32 %v2233, %v2249
    %2254 = vrot.lane.b32.xlu0 %v2188, 64
    %v2255 = vpop.permute.xlu0 %2254
    %v2257 = vsel %vm846, %v2191, %v2255
    %v2259 = vsel %vm980, %v2257, 0
    %2261 = vmatpush.msra.mxu0 0.0
    %2262 = vmatpush.msra.mxu0 0.0
    %2263 = vmatpush.msra.mxu0 0.0
    %2264 = vmatpush.msra.mxu0 0.0
    %2265 = vmatpush.msra.mxu0 0.0
    %2266 = vmatpush.msra.mxu0 0.0
    %2267 = vmatpush.msra.mxu0 0.0
    %2268 = vmatpush.msra.mxu0 0.0
    %2269 = vmatpush.msra.mxu0 %v38
    %2270 = vmatpush.msra.mxu0 %v37
    %2271 = vmatpush.msra.mxu0 %v36
    %2272 = vmatpush.msra.mxu0 %v35
    %2273 = vmatpush.msra.mxu0 %v34
    %2274 = vmatpush.msra.mxu0 %v33
    %2275 = vmatpush.msra.mxu0 %v32
    %2276 = vmatpush.msra.mxu0 %v31
    %2277 = vmatmul.f32.gmra.mxu0 %v2259
    %v2278 = vpop.f32.mrf.mxu0
    %v2279 = vadd.f32 %v2124, %v2278
    %2280 = vdwg.mxu0
    %v2281 = vxor.u32 %v2279, 2147483648
    %v2282 = vmul.f32 %v2281, 1.442695
    %v2283 = vpow.pop %v2282
    %v2284 = vadd.f32 %v2283, 1.0
    %v2285 = vrcp.pop %v2284
    %v2286 = vmul.f32 %v2284, %v2285
    %v2287 = vsub.f32 1.0, %v2286
    %v2288 = vmul.f32 %v2285, %v2287
    %v2289 = vadd.f32 %v2285, %v2288
    %vm2290 = vweird.f32 %v2284
    %vm2291 = vweird.f32 %v2285
    %vm2292 = vmor %vm2290, %vm2291
    %v2293 = vsel %vm2292, %v2285, %v2289
    %v2294 = vand.u32 2147483647, %v2284
    %vm2295 = vcmp.eq.f32.partialorder %v2294, 8.507059e+37
    %v2296 = vand.u32 %v2284, 2147483648
    %v2297 = vor.u32 1.1754944e-38, %v2296
    %v2298 = vsel %vm2295, %v2297, %v2293
    %v2299 = vmul.f32 1.0, %v2298
    %v2300 = vtanh.pop %v2279
    %v2301 = vmul.f32 %v2299, %v2182
    %2303 = vrot.lane.b32.xlu0 %v2300, 64
    %v2304 = vpop.permute.xlu0 %2303
    %v2306 = vmul.f32 %v2299, %v2304
    %2308 = vrot.lane.b32.xlu0 %v2306, 32
    %v2309 = vpop.permute.xlu0 %2308
    %v2311 = vadd.f32 %v2301, %v2309
    %v2312 = vtanh.pop %v2311
    %2314 = vrot.lane.b32.xlu0 %v2312, 64
    %v2315 = vpop.permute.xlu0 %2314
    %v2317 = vmul.f32 %v2299, %v2315
    %2319 = vrot.lane.b32.xlu0 %v2251, 32
    %v2320 = vpop.permute.xlu0 %2319
    %v2321 = vsel %vm846, %v2320, 0
    %2323 = vmatpush.msra.mxu0 0.0
    %2324 = vmatpush.msra.mxu0 0.0
    %2325 = vmatpush.msra.mxu0 0.0
    %2326 = vmatpush.msra.mxu0 0.0
    %2327 = vmatpush.msra.mxu0 0.0
    %2328 = vmatpush.msra.mxu0 0.0
    %2329 = vmatpush.msra.mxu0 0.0
    %2330 = vmatpush.msra.mxu0 0.0
    %2331 = vmatpush.msra.mxu0 0.0
    %2332 = vmatpush.msra.mxu0 0.0
    %2333 = vmatpush.msra.mxu0 0.0
    %2334 = vmatpush.msra.mxu0 0.0
    %2335 = vmatpush.msra.mxu0 %v29
    %2336 = vmatpush.msra.mxu0 %v28
    %2337 = vmatpush.msra.mxu0 %v27
    %2338 = vmatpush.msra.mxu0 %v26
    %2339 = vmatmul.f32.gmra.mxu0 %v2321
    %v2340 = vpop.f32.mrf.mxu0
    %v2341 = vadd.f32 0.0, %v2340
    %2342 = vdwg.mxu0
    %v2343 = vadd.f32 %v1983, %v2341
    %v2344 = vxor.u32 %v2343, 2147483648
    %v2345 = vmul.f32 %v2344, 1.442695
    %v2346 = vpow.pop %v2345
    %v2347 = vadd.f32 %v2346, 1.0
    %v2348 = vrcp.pop %v2347
    %v2349 = vmul.f32 %v2347, %v2348
    %v2350 = vsub.f32 1.0, %v2349
    %v2351 = vmul.f32 %v2348, %v2350
    %v2352 = vadd.f32 %v2348, %v2351
    %vm2353 = vweird.f32 %v2347
    %vm2354 = vweird.f32 %v2348
    %vm2355 = vmor %vm2353, %vm2354
    %v2356 = vsel %vm2355, %v2348, %v2352
    %v2357 = vand.u32 2147483647, %v2347
    %vm2358 = vcmp.eq.f32.partialorder %v2357, 8.507059e+37
    %v2359 = vand.u32 %v2347, 2147483648
    %v2360 = vor.u32 1.1754944e-38, %v2359
    %v2361 = vsel %vm2358, %v2360, %v2356
    %v2362 = vmul.f32 1.0, %v2361
    %v2363 = vtanh.pop %v2343
    %v2364 = vmul.f32 %v2362, %v2245
    %2366 = vrot.lane.b32.xlu0 %v2363, 64
    %v2367 = vpop.permute.xlu0 %2366
    %v2369 = vmul.f32 %v2362, %v2367
    %2371 = vrot.lane.b32.xlu0 %v2369, 32
    %v2372 = vpop.permute.xlu0 %2371
    %v2374 = vadd.f32 %v2364, %v2372
    %v2375 = vtanh.pop %v2374
    %2377 = vrot.lane.b32.xlu0 %v2375, 64
    %v2378 = vpop.permute.xlu0 %2377
    %v2380 = vmul.f32 %v2362, %v2378
    %2383 = vrot.lane.b32.xlu0 %v2317, 64
    %v2384 = vpop.permute.xlu0 %2383
    %v2386 = vsel %vm846, %v2320, %v2384
    %v2388 = vsel %vm980, %v2386, 0
    %2390 = vmatpush.msra.mxu0 0.0
    %2391 = vmatpush.msra.mxu0 0.0
    %2392 = vmatpush.msra.mxu0 0.0
    %2393 = vmatpush.msra.mxu0 0.0
    %2394 = vmatpush.msra.mxu0 0.0
    %2395 = vmatpush.msra.mxu0 0.0
    %2396 = vmatpush.msra.mxu0 0.0
    %2397 = vmatpush.msra.mxu0 0.0
    %2398 = vmatpush.msra.mxu0 %v38
    %2399 = vmatpush.msra.mxu0 %v37
    %2400 = vmatpush.msra.mxu0 %v36
    %2401 = vmatpush.msra.mxu0 %v35
    %2402 = vmatpush.msra.mxu0 %v34
    %2403 = vmatpush.msra.mxu0 %v33
    %2404 = vmatpush.msra.mxu0 %v32
    %2405 = vmatpush.msra.mxu0 %v31
    %2406 = vmatmul.f32.gmra.mxu0 %v2388
    %v2407 = vpop.f32.mrf.mxu0
    %v2408 = vadd.f32 %v2124, %v2407
    %2409 = vdwg.mxu0
    %v2410 = vxor.u32 %v2408, 2147483648
    %v2411 = vmul.f32 %v2410, 1.442695
    %v2412 = vpow.pop %v2411
    %v2413 = vadd.f32 %v2412, 1.0
    %v2414 = vrcp.pop %v2413
    %v2415 = vmul.f32 %v2413, %v2414
    %v2416 = vsub.f32 1.0, %v2415
    %v2417 = vmul.f32 %v2414, %v2416
    %v2418 = vadd.f32 %v2414, %v2417
    %vm2419 = vweird.f32 %v2413
    %vm2420 = vweird.f32 %v2414
    %vm2421 = vmor %vm2419, %vm2420
    %v2422 = vsel %vm2421, %v2414, %v2418
    %v2423 = vand.u32 2147483647, %v2413
    %vm2424 = vcmp.eq.f32.partialorder %v2423, 8.507059e+37
    %v2425 = vand.u32 %v2413, 2147483648
    %v2426 = vor.u32 1.1754944e-38, %v2425
    %v2427 = vsel %vm2424, %v2426, %v2422
    %v2428 = vmul.f32 1.0, %v2427
    %v2429 = vtanh.pop %v2408
    %v2430 = vmul.f32 %v2428, %v2311
    %2432 = vrot.lane.b32.xlu0 %v2429, 64
    %v2433 = vpop.permute.xlu0 %2432
    %v2435 = vmul.f32 %v2428, %v2433
    %2437 = vrot.lane.b32.xlu0 %v2435, 32
    %v2438 = vpop.permute.xlu0 %2437
    %v2440 = vadd.f32 %v2430, %v2438
    %v2441 = vtanh.pop %v2440
    %2443 = vrot.lane.b32.xlu0 %v2441, 64
    %v2444 = vpop.permute.xlu0 %2443
    %v2446 = vmul.f32 %v2428, %v2444
    %2448 = vrot.lane.b32.xlu0 %v2380, 32
    %v2449 = vpop.permute.xlu0 %2448
    %2452 = vrot.lane.b32.xlu0 %v2446, 64
    %v2453 = vpop.permute.xlu0 %2452
    %v2455 = vsel %vm846, %v2449, %v2453
    %v2457 = vsel %vm980, %v2455, 0
    %2459 = vmatpush.msra.mxu0 0.0
    %2460 = vmatpush.msra.mxu0 0.0
    %2461 = vmatpush.msra.mxu0 0.0
    %2462 = vmatpush.msra.mxu0 0.0
    %2463 = vmatpush.msra.mxu0 0.0
    %2464 = vmatpush.msra.mxu0 0.0
    %2465 = vmatpush.msra.mxu0 0.0
    %2466 = vmatpush.msra.mxu0 0.0
    %2467 = vmatpush.msra.mxu0 %v38
    %2468 = vmatpush.msra.mxu0 %v37
    %2469 = vmatpush.msra.mxu0 %v36
    %2470 = vmatpush.msra.mxu0 %v35
    %2471 = vmatpush.msra.mxu0 %v34
    %2472 = vmatpush.msra.mxu0 %v33
    %2473 = vmatpush.msra.mxu0 %v32
    %2474 = vmatpush.msra.mxu0 %v31
    %2475 = vmatmul.f32.gmra.mxu0 %v2457
    %v2476 = vpop.f32.mrf.mxu0
    %v2477 = vadd.f32 %v2124, %v2476
    %2478 = vdwg.mxu0
    %v2479 = vxor.u32 %v2477, 2147483648
    %v2480 = vmul.f32 %v2479, 1.442695
    %v2481 = vpow.pop %v2480
    %v2482 = vadd.f32 %v2481, 1.0
    %v2483 = vrcp.pop %v2482
    %v2484 = vmul.f32 %v2482, %v2483
    %v2485 = vsub.f32 1.0, %v2484
    %v2486 = vmul.f32 %v2483, %v2485
    %v2487 = vadd.f32 %v2483, %v2486
    %vm2488 = vweird.f32 %v2482
    %vm2489 = vweird.f32 %v2483
    %vm2490 = vmor %vm2488, %vm2489
    %v2491 = vsel %vm2490, %v2483, %v2487
    %v2492 = vand.u32 2147483647, %v2482
    %vm2493 = vcmp.eq.f32.partialorder %v2492, 8.507059e+37
    %v2494 = vand.u32 %v2482, 2147483648
    %v2495 = vor.u32 1.1754944e-38, %v2494
    %v2496 = vsel %vm2493, %v2495, %v2491
    %v2497 = vmul.f32 1.0, %v2496
    %v2498 = vtanh.pop %v2477
    %v2499 = vmul.f32 %v2497, %v2440
    %2501 = vrot.lane.b32.xlu0 %v2498, 64
    %v2502 = vpop.permute.xlu0 %2501
    %v2504 = vmul.f32 %v2497, %v2502
    %2506 = vrot.lane.b32.xlu0 %v2504, 32
    %v2507 = vpop.permute.xlu0 %2506
    %v2509 = vadd.f32 %v2499, %v2507
    %v2510 = vtanh.pop %v2509
    %2512 = vrot.lane.b32.xlu0 %v2510, 64
    %v2513 = vpop.permute.xlu0 %2512
    %v2515 = vmul.f32 %v2497, %v2513
    %v2516 = vld [vmem:[%s3 + $0x170] sm:$0xff]
    %v2517 = vld [vmem:[%s3 + $0x178] sm:$0xff]
    %v2518 = vld [vmem:[%s3 + $0x180] sm:$0xff]
    %v2519 = vld [vmem:[%s3 + $0x188] sm:$0xff]
    %v2520 = vld [vmem:[%s3 + $0x190] sm:$0x1]
    %v2521 = vperm.slane %v2520, 0
    %2523 = vrot.lane.b32.xlu0 %v2515, 32
    %v2524 = vpop.permute.xlu0 %2523
    %v2525 = vsel %vm846, %v2524, 0
    %2527 = vmatpush.msra.mxu0 0.0
    %2528 = vmatpush.msra.mxu0 0.0
    %2529 = vmatpush.msra.mxu0 0.0
    %2530 = vmatpush.msra.mxu0 0.0
    %2531 = vmatpush.msra.mxu0 0.0
    %2532 = vmatpush.msra.mxu0 0.0
    %2533 = vmatpush.msra.mxu0 0.0
    %2534 = vmatpush.msra.mxu0 0.0
    %2535 = vmatpush.msra.mxu0 0.0
    %2536 = vmatpush.msra.mxu0 0.0
    %2537 = vmatpush.msra.mxu0 0.0
    %2538 = vmatpush.msra.mxu0 0.0
    %2539 = vmatpush.msra.mxu0 %v2519
    %2540 = vmatpush.msra.mxu0 %v2518
    %2541 = vmatpush.msra.mxu0 %v2517
    %2542 = vmatpush.msra.mxu0 %v2516
    %2543 = vmatmul.f32.gmra.mxu0 %v2525
    %v2544 = vpop.f32.mrf.mxu0
    %v2545 = vadd.f32 %v2521, %v2544
    %2546 = vdwg.mxu0
    %v2547 = vmax.f32 %v2545, 0.0
    %v2548 = vld [vmem:[%s3 + $0x198] sm:$0xff]
    %v2549 = vld [vmem:[%s3 + $0x1a0] sm:$0xff]
    %v2550 = vld [vmem:[%s3 + $0x1a8] sm:$0x1]
    %v2551 = vperm.slane %v2550, 0
    %v2553 = vsel %vm573, %v2547, 0
    %2555 = vmatpush.msra.mxu0 0.0
    %2556 = vmatpush.msra.mxu0 0.0
    %2557 = vmatpush.msra.mxu0 0.0
    %2558 = vmatpush.msra.mxu0 0.0
    %2559 = vmatpush.msra.mxu0 0.0
    %2560 = vmatpush.msra.mxu0 0.0
    %2561 = vmatpush.msra.mxu0 0.0
    %2562 = vmatpush.msra.mxu0 0.0
    %2563 = vmatpush.msra.mxu0 0.0
    %2564 = vmatpush.msra.mxu0 0.0
    %2565 = vmatpush.msra.mxu0 0.0
    %2566 = vmatpush.msra.mxu0 0.0
    %2567 = vmatpush.msra.mxu0 0.0
    %2568 = vmatpush.msra.mxu0 0.0
    %2569 = vmatpush.msra.mxu0 %v2549
    %2570 = vmatpush.msra.mxu0 %v2548
    %2571 = vmatmul.f32.gmra.mxu0 %v2553
    %v2572 = vpop.f32.mrf.mxu0
    %v2573 = vadd.f32 %v2551, %v2572
    %2574 = vdwg.mxu0
    %v2575 = vmax.f32 %v2573, 0.0
    %v2576 = vld [vmem:[%s3 + $0x1b0] sm:$0xff]
    %v2577 = vld [vmem:[%s3 + $0x1b8] sm:$0x1]
    %v2578 = vperm.slane %v2577, 0
    %vm2579 = vcmask 64512
    %v2581 = vsel %vm2579, %v2575, 0
    %2583 = vmatpush.msra.mxu0 0.0
    %2584 = vmatpush.msra.mxu0 0.0
    %2585 = vmatpush.msra.mxu0 0.0
    %2586 = vmatpush.msra.mxu0 0.0
    %2587 = vmatpush.msra.mxu0 0.0
    %2588 = vmatpush.msra.mxu0 0.0
    %2589 = vmatpush.msra.mxu0 0.0
    %2590 = vmatpush.msra.mxu0 0.0
    %2591 = vmatpush.msra.mxu0 0.0
    %2592 = vmatpush.msra.mxu0 0.0
    %2593 = vmatpush.msra.mxu0 0.0
    %2594 = vmatpush.msra.mxu0 0.0
    %2595 = vmatpush.msra.mxu0 0.0
    %2596 = vmatpush.msra.mxu0 0.0
    %2597 = vmatpush.msra.mxu0 0.0
    %2598 = vmatpush.msra.mxu0 %v2576
    %2599 = vmatmul.f32.gmra.mxu0 %v2581
    %v2600 = vpop.f32.mrf.mxu0
    %v2601 = vadd.f32 %v2578, %v2600
    %2602 = vdwg.mxu0
    %vm2603 = vcmask 17408
    %2604 = vst.msk [vmem:[#allocation5] sm:$0x3] %vm2603, %v2601
    // Predicated region
    $region18: #{lstm1dcnn_forward.1} parent=1 // pred_check
      _
    $region19: #{lstm1dcnn_forward.1} parent=1 // pred_check_branch
      %2606 = sbr.rel (0) target = $region21
    $region20: #{lstm1dcnn_forward.1} parent=1 // pred_region
      %2608 = vsyncadd [#allocation6], 0
      %s2610 = sshll.u32 [#allocation5], 4
      %s2611 = int_to_ptr.vmem [resolvable:$true] %s2610
      %s2612 = sshll.u32 %s4, 4
      %s2613 = int_to_ptr.hbm [resolvable:$true] %s2612
      %2615 = dma.vmem_to_hbm [thread:$0]  %s2611, 32, %s2613, [#allocation6]
    $region21: #{lstm1dcnn_forward.1} parent=1 // pred_fallthru
      _
    // Predicated region
    $region22: #{lstm1dcnn_forward.1} parent=1 // pred_check
      _
    $region23: #{lstm1dcnn_forward.1} parent=1 // pred_check_branch
      %2617 = sbr.rel (0) target = $region25
    $region24: #{lstm1dcnn_forward.1} parent=1 // pred_region
      %2619 = dma.done [#allocation6], 32
    $region25: #{lstm1dcnn_forward.1} parent=1 // pred_fallthru
      _
    %2620 = vsyncpa [#allocation6], 1

</llo_original>
